<compile_context>
chip_gen: v6e
topology: v6e:2x2x1
jax: 0.10.0
libtpu: 0.0.40
codegen_flags: <defaults>
</compile_context>

<pallas_src>
import functools

import jax
import jax.numpy as jnp
import numpy as np
from jax.experimental import pallas as pl
from jax.experimental.pallas import tpu as pltpu


# ----------------------------------------------------------------------------
# Fused kernel: frame embedding + packed LSTM + masked temporal mean + Linear
# ----------------------------------------------------------------------------
def cnn_rnn_fused_kernel(frames_ref, mask_ref, w_enc_ref, b_enc_ref,
                         w_conv_ref, b_conv_ref, w_ih_ref, b_lstm_ref,
                         w_hh_ref, w_fc_ref, b_fc_ref, out_ref,
                         *, B, S, rnn_hidden):
    Hr = rnn_hidden

    # ---- per-frame CNN embedding, all S*B frames in one matmul batch --------
    # frames_ref: (B*S, C, H*W) float32, lane-dense last dim.
    # TODO(synk): the pretrained ResNet34 backbone of CNNEncoder is not
    # reproduced; it is replaced by global-avg-pool + Linear(C->512) + ReLU
    # producing the 512-d feature that resnet34's adaptive avgpool would emit.
    x = frames_ref[...].astype(jnp.float32)                       # (B*S, C, HW)
    pooled = jnp.mean(x, axis=-1)                                 # (B*S, C)
    feat = jnp.maximum(
        jnp.dot(pooled, w_enc_ref[...], preferred_element_type=jnp.float32)
        + b_enc_ref[...], 0.0)                                    # (B*S, 512)
    # Conv2d(512, hidden, 1) on a 1x1 spatial map == Linear, then ReLU.
    emb = jnp.maximum(
        jnp.dot(feat, w_conv_ref[...], preferred_element_type=jnp.float32)
        + b_conv_ref[...], 0.0)                                   # (B*S, hidden)

    # ---- LSTM input-gate contributions for every time step, one matmul ------
    xg = (jnp.dot(emb, w_ih_ref[...], preferred_element_type=jnp.float32)
          + b_lstm_ref[...])                                      # (B*S, 4*Hr)
    xg = xg.reshape(B, S, 4 * Hr)                                 # batch-major

    mask = mask_ref[...].astype(jnp.float32)                      # (B, S)
    w_hh = w_hh_ref[...]                                          # (Hr, 4*Hr)

    h = jnp.zeros((B, Hr), jnp.float32)
    c = jnp.zeros((B, Hr), jnp.float32)
    acc = jnp.zeros((B, Hr), jnp.float32)

    # Fully unrolled recurrence (S is small); only h @ W_hh is sequential.
    for t in range(S):
        gates = xg[:, t, :] + jnp.dot(h, w_hh,
                                      preferred_element_type=jnp.float32)
        # Activate the full 4*Hr width once on the EUP, then slice.
        sig = jax.nn.sigmoid(gates)
        th = jnp.tanh(gates)
        i_g = sig[:, 0 * Hr:1 * Hr]
        f_g = sig[:, 1 * Hr:2 * Hr]
        g_g = th[:, 2 * Hr:3 * Hr]
        o_g = sig[:, 3 * Hr:4 * Hr]

        c_new = f_g * c + i_g * g_g
        h_new = o_g * jnp.tanh(c_new)

        # pack_padded_sequence semantics: state frozen, output zero past length.
        m = mask[:, t:t + 1]                                      # (B, 1)
        h = m * h_new + (1.0 - m) * h
        c = m * c_new + (1.0 - m) * c
        acc = acc + m * h_new

    # Temporal mean (1/max(f_lens) folded into w_fc by the wrapper) + Linear.
    # Dropout(p=0) is the identity.
    logits = (jnp.dot(acc, w_fc_ref[...], preferred_element_type=jnp.float32)
              + b_fc_ref[...])
    out_ref[...] = logits.astype(out_ref.dtype)


# ----------------------------------------------------------------------------
# Parameter construction (deterministic, synthetic)
# ----------------------------------------------------------------------------
def init_params(key, *, in_ch, enc_feat, hidden, rnn_hidden, num_classes):
    ks = jax.random.split(key, 8)
    s = 0.1
    return dict(
        w_enc=jax.random.normal(ks[0], (in_ch, enc_feat), jnp.float32) * s,
        b_enc=jax.random.normal(ks[1], (1, enc_feat), jnp.float32) * s,
        w_conv=jax.random.normal(ks[2], (enc_feat, hidden), jnp.float32) * s,
        b_conv=jax.random.normal(ks[3], (1, hidden), jnp.float32) * s,
        w_ih=jax.random.normal(ks[4], (hidden, 4 * rnn_hidden), jnp.float32) * s,
        w_hh=jax.random.normal(ks[5], (rnn_hidden, 4 * rnn_hidden), jnp.float32) * s,
        b_lstm=jax.random.normal(ks[6], (1, 4 * rnn_hidden), jnp.float32) * s,
        w_fc=jax.random.normal(ks[7], (rnn_hidden, num_classes), jnp.float32) * s,
        b_fc=jnp.zeros((1, num_classes), jnp.float32),
    )


# ----------------------------------------------------------------------------
# Wrapper
# ----------------------------------------------------------------------------
def cnn_rnn_forward(frames_bschw, f_lens, params, *, hidden, rnn_hidden,
                    num_classes):
    """frames_bschw: (B, S, C, H, W) float32 ; f_lens: (B,) int32."""
    B, S, C, H, W = frames_bschw.shape
    enc_feat = params["w_enc"].shape[1]
    HW = H * W

    # Free contiguous reshape (no transpose / HBM copy): lane-dense frames.
    frames_flat = frames_bschw.reshape(B * S, C, HW)

    # Padding mask (B, S): 1.0 where t < f_lens[b].
    mask = (jnp.arange(S)[None, :] < f_lens[:, None]).astype(jnp.float32)
    # Fold the temporal mean's 1/max(f_lens) into the fc weight.
    t_max = jnp.max(f_lens).astype(jnp.float32)
    w_fc_scaled = params["w_fc"] / t_max

    # Advisory cost estimate (Python ints).
    flops = (2 * B * S * (C * enc_feat + enc_feat * hidden
                          + hidden * 4 * rnn_hidden)
             + 2 * S * B * rnn_hidden * 4 * rnn_hidden
             + 2 * B * rnn_hidden * num_classes)
    transcendentals = S * B * (2 * 4 * rnn_hidden + rnn_hidden)
    bytes_accessed = 4 * (B * S * C * H * W + B * S
                          + C * enc_feat + enc_feat
                          + enc_feat * hidden + hidden
                          + hidden * 4 * rnn_hidden + 4 * rnn_hidden
                          + rnn_hidden * 4 * rnn_hidden
                          + rnn_hidden * num_classes + num_classes
                          + B * num_classes)

    kernel = functools.partial(cnn_rnn_fused_kernel, B=B, S=S,
                               rnn_hidden=rnn_hidden)

    logits = pl.pallas_call(
        kernel,
        out_shape=jax.ShapeDtypeStruct((B, num_classes), jnp.float32),
        grid_spec=pltpu.PrefetchScalarGridSpec(
            num_scalar_prefetch=0,
            grid=(1,),
            in_specs=[
                pl.BlockSpec((B * S, C, HW), lambda i: (0, 0, 0)),
                pl.BlockSpec((B, S), lambda i: (0, 0)),
                pl.BlockSpec((C, enc_feat), lambda i: (0, 0)),
                pl.BlockSpec((1, enc_feat), lambda i: (0, 0)),
                pl.BlockSpec((enc_feat, hidden), lambda i: (0, 0)),
                pl.BlockSpec((1, hidden), lambda i: (0, 0)),
                pl.BlockSpec((hidden, 4 * rnn_hidden), lambda i: (0, 0)),
                pl.BlockSpec((1, 4 * rnn_hidden), lambda i: (0, 0)),
                pl.BlockSpec((rnn_hidden, 4 * rnn_hidden), lambda i: (0, 0)),
                pl.BlockSpec((rnn_hidden, num_classes), lambda i: (0, 0)),
                pl.BlockSpec((1, num_classes), lambda i: (0, 0)),
            ],
            out_specs=pl.BlockSpec((B, num_classes), lambda i: (0, 0)),
        ),
        compiler_params=pltpu.CompilerParams(
            dimension_semantics=("arbitrary",)),
        cost_estimate=pl.CostEstimate(flops=flops,
                                      transcendentals=transcendentals,
                                      bytes_accessed=bytes_accessed),
    )(frames_flat, mask, params["w_enc"], params["b_enc"], params["w_conv"],
      params["b_conv"], params["w_ih"], params["b_lstm"], params["w_hh"],
      w_fc_scaled, params["b_fc"])
    return logits


# ----------------------------------------------------------------------------
# Pure-JAX reference (same math, no Pallas) for a correctness check
# ----------------------------------------------------------------------------
def reference_forward(frames_bschw, f_lens, params, *, hidden, rnn_hidden,
                      num_classes):
    B, S, C, H, W = frames_bschw.shape
    frames = jnp.transpose(frames_bschw, (1, 0, 2, 3, 4)).astype(jnp.float32)
    pooled = jnp.mean(frames, axis=(3, 4))                                   # (S, B, C)
    feat = jax.nn.relu(pooled @ params["w_enc"] + params["b_enc"])           # (S, B, 512)
    emb = jax.nn.relu(feat @ params["w_conv"] + params["b_conv"])            # (S, B, hidden)
    mask = (jnp.arange(S)[:, None] < f_lens[None, :]).astype(jnp.float32)    # (S, B)

    def step(carry, inp):
        h, c = carry
        x, m = inp
        m = m[:, None]
        gates = x @ params["w_ih"] + h @ params["w_hh"] + params["b_lstm"]
        Hr = rnn_hidden
        i_g = jax.nn.sigmoid(gates[:, 0 * Hr:1 * Hr])
        f_g = jax.nn.sigmoid(gates[:, 1 * Hr:2 * Hr])
        g_g = jnp.tanh(gates[:, 2 * Hr:3 * Hr])
        o_g = jax.nn.sigmoid(gates[:, 3 * Hr:4 * Hr])
        c_new = f_g * c + i_g * g_g
        h_new = o_g * jnp.tanh(c_new)
        return (m * h_new + (1 - m) * h, m * c_new + (1 - m) * c), m * h_new

    init = (jnp.zeros((B, rnn_hidden), jnp.float32),
            jnp.zeros((B, rnn_hidden), jnp.float32))
    _, outs = jax.lax.scan(step, init, (emb, mask))                          # (S, B, Hr)
    mean_out = jnp.sum(outs, axis=0) / jnp.max(f_lens).astype(jnp.float32)
    return mean_out @ params["w_fc"] + params["b_fc"]


# ----------------------------------------------------------------------------
if __name__ == "__main__":
    # small shapes consistent with the module's forward
    B, S, C, H, W = 2, 8, 3, 16, 16
    HIDDEN, RNN_HIDDEN, NUM_CLASSES, ENC_FEAT = 32, 32, 5, 512

    key = jax.random.PRNGKey(0)
    k_data, k_param = jax.random.split(key)
    frames = jax.random.normal(k_data, (B, S, C, H, W), jnp.float32)
    f_lens = jnp.array([6, 4], dtype=jnp.int32)       # padded lengths <= S

    params = init_params(k_param, in_ch=C, enc_feat=ENC_FEAT, hidden=HIDDEN,
                         rnn_hidden=RNN_HIDDEN, num_classes=NUM_CLASSES)

    logits = cnn_rnn_forward(frames, f_lens, params,
                             hidden=HIDDEN, rnn_hidden=RNN_HIDDEN,
                             num_classes=NUM_CLASSES)
    logits = jax.block_until_ready(logits)

    ref = reference_forward(frames, f_lens, params,
                            hidden=HIDDEN, rnn_hidden=RNN_HIDDEN,
                            num_classes=NUM_CLASSES)
    np.testing.assert_allclose(np.asarray(logits), np.asarray(ref),
                               rtol=1e-3, atol=1e-3)
    assert logits.shape == (B, NUM_CLASSES)
    print("KERNEL_OK")
</pallas_src>

<mosaic_0001>
module attributes {stable_mosaic.version = 11 : i64} {
  func.func @cnn_rnn_fused_kernel(%arg0: i32, %arg1: memref<16x3x256xf32, #tpu.memory_space<vmem>>, %arg2: memref<2x8xf32, #tpu.memory_space<vmem>>, %arg3: memref<3x512xf32, #tpu.memory_space<vmem>>, %arg4: memref<1x512xf32, #tpu.memory_space<vmem>>, %arg5: memref<512x32xf32, #tpu.memory_space<vmem>>, %arg6: memref<1x32xf32, #tpu.memory_space<vmem>>, %arg7: memref<32x128xf32, #tpu.memory_space<vmem>>, %arg8: memref<1x128xf32, #tpu.memory_space<vmem>>, %arg9: memref<32x128xf32, #tpu.memory_space<vmem>>, %arg10: memref<32x5xf32, #tpu.memory_space<vmem>>, %arg11: memref<1x5xf32, #tpu.memory_space<vmem>>, %arg12: memref<2x5xf32, #tpu.memory_space<vmem>>) attributes {dimension_semantics = [#tpu.dimension_semantics<arbitrary>], iteration_bounds = array<i64: 1>, scalar_prefetch = 0 : i64, scratch_operands = 0 : i64, tpu.core_type = #tpu.core_type<tc>, window_params = [{pipeline_mode = #tpu.pipeline_mode<synchronous>, transform_indices = @transform_0, window_bounds = array<i64: 16, 3, 256>}, {pipeline_mode = #tpu.pipeline_mode<synchronous>, transform_indices = @transform_1, window_bounds = array<i64: 2, 8>}, {pipeline_mode = #tpu.pipeline_mode<synchronous>, transform_indices = @transform_2, window_bounds = array<i64: 3, 512>}, {pipeline_mode = #tpu.pipeline_mode<synchronous>, transform_indices = @transform_3, window_bounds = array<i64: 1, 512>}, {pipeline_mode = #tpu.pipeline_mode<synchronous>, transform_indices = @transform_4, window_bounds = array<i64: 512, 32>}, {pipeline_mode = #tpu.pipeline_mode<synchronous>, transform_indices = @transform_5, window_bounds = array<i64: 1, 32>}, {pipeline_mode = #tpu.pipeline_mode<synchronous>, transform_indices = @transform_6, window_bounds = array<i64: 32, 128>}, {pipeline_mode = #tpu.pipeline_mode<synchronous>, transform_indices = @transform_7, window_bounds = array<i64: 1, 128>}, {pipeline_mode = #tpu.pipeline_mode<synchronous>, transform_indices = @transform_8, window_bounds = array<i64: 32, 128>}, {pipeline_mode = #tpu.pipeline_mode<synchronous>, transform_indices = @transform_9, window_bounds = array<i64: 32, 5>}, {pipeline_mode = #tpu.pipeline_mode<synchronous>, transform_indices = @transform_10, window_bounds = array<i64: 1, 5>}, {pipeline_mode = #tpu.pipeline_mode<synchronous>, transform_indices = @transform_11, window_bounds = array<i64: 2, 5>}]} {
    %c0 = arith.constant 0 : index
    %c0_0 = arith.constant 0 : index
    %c0_1 = arith.constant 0 : index
    %0 = vector.load %arg1[%c0, %c0_0, %c0_1] : memref<16x3x256xf32, #tpu.memory_space<vmem>>, vector<16x3x256xf32>
    %cst = arith.constant dense<0.000000e+00> : vector<16x3xf32>
    %1 = vector.multi_reduction <add>, %0, %cst [2] : vector<16x3x256xf32> to vector<16x3xf32>
    %cst_2 = arith.constant 2.560000e+02 : f32
    %2 = vector.broadcast %cst_2 : f32 to vector<16x3xf32>
    %3 = arith.divf %1, %2 : vector<16x3xf32>
    %c0_3 = arith.constant 0 : index
    %c0_4 = arith.constant 0 : index
    %4 = vector.load %arg3[%c0_3, %c0_4] : memref<3x512xf32, #tpu.memory_space<vmem>>, vector<3x512xf32>
    %cst_5 = arith.constant dense<0.000000e+00> : vector<16x512xf32>
    %5 = tpu.matmul %3, %4, %cst_5 {dimension_numbers = #tpu.dot_dimension_numbers<[1], [0], [0], [1], [0, 0, 1, 1], [], []>} : vector<16x3xf32>, vector<3x512xf32>, vector<16x512xf32> -> vector<16x512xf32>
    %c0_6 = arith.constant 0 : index
    %c0_7 = arith.constant 0 : index
    %6 = vector.load %arg4[%c0_6, %c0_7] : memref<1x512xf32, #tpu.memory_space<vmem>>, vector<1x512xf32>
    %7 = vector.broadcast %6 : vector<1x512xf32> to vector<16x512xf32>
    %8 = arith.addf %5, %7 : vector<16x512xf32>
    %cst_8 = arith.constant 0.000000e+00 : f32
    %9 = vector.broadcast %cst_8 : f32 to vector<16x512xf32>
    %10 = arith.maximumf %8, %9 : vector<16x512xf32>
    %c0_9 = arith.constant 0 : index
    %c0_10 = arith.constant 0 : index
    %11 = vector.load %arg5[%c0_9, %c0_10] : memref<512x32xf32, #tpu.memory_space<vmem>>, vector<512x32xf32>
    %cst_11 = arith.constant dense<0.000000e+00> : vector<16x32xf32>
    %12 = tpu.matmul %10, %11, %cst_11 {dimension_numbers = #tpu.dot_dimension_numbers<[1], [0], [0], [1], [0, 0, 1, 1], [], []>} : vector<16x512xf32>, vector<512x32xf32>, vector<16x32xf32> -> vector<16x32xf32>
    %c0_12 = arith.constant 0 : index
    %c0_13 = arith.constant 0 : index
    %13 = vector.load %arg6[%c0_12, %c0_13] : memref<1x32xf32, #tpu.memory_space<vmem>>, vector<1x32xf32>
    %14 = vector.broadcast %13 : vector<1x32xf32> to vector<16x32xf32>
    %15 = arith.addf %12, %14 : vector<16x32xf32>
    %cst_14 = arith.constant 0.000000e+00 : f32
    %16 = vector.broadcast %cst_14 : f32 to vector<16x32xf32>
    %17 = arith.maximumf %15, %16 : vector<16x32xf32>
    %c0_15 = arith.constant 0 : index
    %c0_16 = arith.constant 0 : index
    %18 = vector.load %arg7[%c0_15, %c0_16] : memref<32x128xf32, #tpu.memory_space<vmem>>, vector<32x128xf32>
    %cst_17 = arith.constant dense<0.000000e+00> : vector<16x128xf32>
    %19 = tpu.matmul %17, %18, %cst_17 {dimension_numbers = #tpu.dot_dimension_numbers<[1], [0], [0], [1], [0, 0, 1, 1], [], []>} : vector<16x32xf32>, vector<32x128xf32>, vector<16x128xf32> -> vector<16x128xf32>
    %c0_18 = arith.constant 0 : index
    %c0_19 = arith.constant 0 : index
    %20 = vector.load %arg8[%c0_18, %c0_19] : memref<1x128xf32, #tpu.memory_space<vmem>>, vector<1x128xf32>
    %21 = vector.broadcast %20 : vector<1x128xf32> to vector<16x128xf32>
    %22 = arith.addf %19, %21 : vector<16x128xf32>
    %23 = vector.shape_cast %22 : vector<16x128xf32> to vector<2x8x128xf32>
    %c0_20 = arith.constant 0 : index
    %c0_21 = arith.constant 0 : index
    %24 = vector.load %arg2[%c0_20, %c0_21] : memref<2x8xf32, #tpu.memory_space<vmem>>, vector<2x8xf32>
    %c0_22 = arith.constant 0 : index
    %c0_23 = arith.constant 0 : index
    %25 = vector.load %arg9[%c0_22, %c0_23] : memref<32x128xf32, #tpu.memory_space<vmem>>, vector<32x128xf32>
    %cst_24 = arith.constant 0.000000e+00 : f32
    %26 = vector.broadcast %cst_24 : f32 to vector<2x32xf32>
    %cst_25 = arith.constant 0.000000e+00 : f32
    %27 = vector.broadcast %cst_25 : f32 to vector<2x32xf32>
    %cst_26 = arith.constant 0.000000e+00 : f32
    %28 = vector.broadcast %cst_26 : f32 to vector<2x32xf32>
    %29 = vector.extract_strided_slice %23 {offsets = [0, 0, 0], sizes = [2, 1, 128], strides = [1, 1, 1]} : vector<2x8x128xf32> to vector<2x1x128xf32>
    %30 = vector.shape_cast %29 : vector<2x1x128xf32> to vector<2x128xf32>
    %cst_27 = arith.constant dense<0.000000e+00> : vector<2x128xf32>
    %31 = tpu.matmul %26, %25, %cst_27 {dimension_numbers = #tpu.dot_dimension_numbers<[1], [0], [0], [1], [0, 0, 1, 1], [], []>} : vector<2x32xf32>, vector<32x128xf32>, vector<2x128xf32> -> vector<2x128xf32>
    %32 = arith.addf %30, %31 : vector<2x128xf32>
    %33 = arith.negf %32 : vector<2x128xf32>
    %34 = math.exp %33 : vector<2x128xf32>
    %cst_28 = arith.constant 1.000000e+00 : f32
    %35 = vector.broadcast %cst_28 : f32 to vector<2x128xf32>
    %36 = arith.addf %35, %34 : vector<2x128xf32>
    %37 = arith.divf %35, %36 : vector<2x128xf32>
    %38 = math.tanh %32 : vector<2x128xf32>
    %39 = vector.extract_strided_slice %37 {offsets = [0, 0], sizes = [2, 32], strides = [1, 1]} : vector<2x128xf32> to vector<2x32xf32>
    %40 = vector.extract_strided_slice %37 {offsets = [0, 32], sizes = [2, 32], strides = [1, 1]} : vector<2x128xf32> to vector<2x32xf32>
    %41 = vector.extract_strided_slice %38 {offsets = [0, 64], sizes = [2, 32], strides = [1, 1]} : vector<2x128xf32> to vector<2x32xf32>
    %42 = vector.extract_strided_slice %37 {offsets = [0, 96], sizes = [2, 32], strides = [1, 1]} : vector<2x128xf32> to vector<2x32xf32>
    %43 = arith.mulf %40, %27 : vector<2x32xf32>
    %44 = arith.mulf %39, %41 : vector<2x32xf32>
    %45 = arith.addf %43, %44 : vector<2x32xf32>
    %46 = math.tanh %45 : vector<2x32xf32>
    %47 = arith.mulf %42, %46 : vector<2x32xf32>
    %48 = vector.extract_strided_slice %24 {offsets = [0, 0], sizes = [2, 1], strides = [1, 1]} : vector<2x8xf32> to vector<2x1xf32>
    %49 = vector.broadcast %48 : vector<2x1xf32> to vector<2x32xf32>
    %50 = arith.mulf %49, %47 : vector<2x32xf32>
    %cst_29 = arith.constant 1.000000e+00 : f32
    %51 = vector.broadcast %cst_29 : f32 to vector<2x1xf32>
    %52 = arith.subf %51, %48 : vector<2x1xf32>
    %53 = vector.broadcast %52 : vector<2x1xf32> to vector<2x32xf32>
    %54 = arith.mulf %53, %26 : vector<2x32xf32>
    %55 = arith.addf %50, %54 : vector<2x32xf32>
    %56 = vector.broadcast %48 : vector<2x1xf32> to vector<2x32xf32>
    %57 = arith.mulf %56, %45 : vector<2x32xf32>
    %cst_30 = arith.constant 1.000000e+00 : f32
    %58 = vector.broadcast %cst_30 : f32 to vector<2x1xf32>
    %59 = arith.subf %58, %48 : vector<2x1xf32>
    %60 = vector.broadcast %59 : vector<2x1xf32> to vector<2x32xf32>
    %61 = arith.mulf %60, %27 : vector<2x32xf32>
    %62 = arith.addf %57, %61 : vector<2x32xf32>
    %63 = vector.broadcast %48 : vector<2x1xf32> to vector<2x32xf32>
    %64 = arith.mulf %63, %47 : vector<2x32xf32>
    %65 = arith.addf %28, %64 : vector<2x32xf32>
    %66 = vector.extract_strided_slice %23 {offsets = [0, 1, 0], sizes = [2, 1, 128], strides = [1, 1, 1]} : vector<2x8x128xf32> to vector<2x1x128xf32>
    %67 = vector.shape_cast %66 : vector<2x1x128xf32> to vector<2x128xf32>
    %cst_31 = arith.constant dense<0.000000e+00> : vector<2x128xf32>
    %68 = tpu.matmul %55, %25, %cst_31 {dimension_numbers = #tpu.dot_dimension_numbers<[1], [0], [0], [1], [0, 0, 1, 1], [], []>} : vector<2x32xf32>, vector<32x128xf32>, vector<2x128xf32> -> vector<2x128xf32>
    %69 = arith.addf %67, %68 : vector<2x128xf32>
    %70 = arith.negf %69 : vector<2x128xf32>
    %71 = math.exp %70 : vector<2x128xf32>
    %cst_32 = arith.constant 1.000000e+00 : f32
    %72 = vector.broadcast %cst_32 : f32 to vector<2x128xf32>
    %73 = arith.addf %72, %71 : vector<2x128xf32>
    %74 = arith.divf %72, %73 : vector<2x128xf32>
    %75 = math.tanh %69 : vector<2x128xf32>
    %76 = vector.extract_strided_slice %74 {offsets = [0, 0], sizes = [2, 32], strides = [1, 1]} : vector<2x128xf32> to vector<2x32xf32>
    %77 = vector.extract_strided_slice %74 {offsets = [0, 32], sizes = [2, 32], strides = [1, 1]} : vector<2x128xf32> to vector<2x32xf32>
    %78 = vector.extract_strided_slice %75 {offsets = [0, 64], sizes = [2, 32], strides = [1, 1]} : vector<2x128xf32> to vector<2x32xf32>
    %79 = vector.extract_strided_slice %74 {offsets = [0, 96], sizes = [2, 32], strides = [1, 1]} : vector<2x128xf32> to vector<2x32xf32>
    %80 = arith.mulf %77, %62 : vector<2x32xf32>
    %81 = arith.mulf %76, %78 : vector<2x32xf32>
    %82 = arith.addf %80, %81 : vector<2x32xf32>
    %83 = math.tanh %82 : vector<2x32xf32>
    %84 = arith.mulf %79, %83 : vector<2x32xf32>
    %85 = vector.extract_strided_slice %24 {offsets = [0, 1], sizes = [2, 1], strides = [1, 1]} : vector<2x8xf32> to vector<2x1xf32>
    %86 = vector.broadcast %85 : vector<2x1xf32> to vector<2x32xf32>
    %87 = arith.mulf %86, %84 : vector<2x32xf32>
    %cst_33 = arith.constant 1.000000e+00 : f32
    %88 = vector.broadcast %cst_33 : f32 to vector<2x1xf32>
    %89 = arith.subf %88, %85 : vector<2x1xf32>
    %90 = vector.broadcast %89 : vector<2x1xf32> to vector<2x32xf32>
    %91 = arith.mulf %90, %55 : vector<2x32xf32>
    %92 = arith.addf %87, %91 : vector<2x32xf32>
    %93 = vector.broadcast %85 : vector<2x1xf32> to vector<2x32xf32>
    %94 = arith.mulf %93, %82 : vector<2x32xf32>
    %cst_34 = arith.constant 1.000000e+00 : f32
    %95 = vector.broadcast %cst_34 : f32 to vector<2x1xf32>
    %96 = arith.subf %95, %85 : vector<2x1xf32>
    %97 = vector.broadcast %96 : vector<2x1xf32> to vector<2x32xf32>
    %98 = arith.mulf %97, %62 : vector<2x32xf32>
    %99 = arith.addf %94, %98 : vector<2x32xf32>
    %100 = vector.broadcast %85 : vector<2x1xf32> to vector<2x32xf32>
    %101 = arith.mulf %100, %84 : vector<2x32xf32>
    %102 = arith.addf %65, %101 : vector<2x32xf32>
    %103 = vector.extract_strided_slice %23 {offsets = [0, 2, 0], sizes = [2, 1, 128], strides = [1, 1, 1]} : vector<2x8x128xf32> to vector<2x1x128xf32>
    %104 = vector.shape_cast %103 : vector<2x1x128xf32> to vector<2x128xf32>
    %cst_35 = arith.constant dense<0.000000e+00> : vector<2x128xf32>
    %105 = tpu.matmul %92, %25, %cst_35 {dimension_numbers = #tpu.dot_dimension_numbers<[1], [0], [0], [1], [0, 0, 1, 1], [], []>} : vector<2x32xf32>, vector<32x128xf32>, vector<2x128xf32> -> vector<2x128xf32>
    %106 = arith.addf %104, %105 : vector<2x128xf32>
    %107 = arith.negf %106 : vector<2x128xf32>
    %108 = math.exp %107 : vector<2x128xf32>
    %cst_36 = arith.constant 1.000000e+00 : f32
    %109 = vector.broadcast %cst_36 : f32 to vector<2x128xf32>
    %110 = arith.addf %109, %108 : vector<2x128xf32>
    %111 = arith.divf %109, %110 : vector<2x128xf32>
    %112 = math.tanh %106 : vector<2x128xf32>
    %113 = vector.extract_strided_slice %111 {offsets = [0, 0], sizes = [2, 32], strides = [1, 1]} : vector<2x128xf32> to vector<2x32xf32>
    %114 = vector.extract_strided_slice %111 {offsets = [0, 32], sizes = [2, 32], strides = [1, 1]} : vector<2x128xf32> to vector<2x32xf32>
    %115 = vector.extract_strided_slice %112 {offsets = [0, 64], sizes = [2, 32], strides = [1, 1]} : vector<2x128xf32> to vector<2x32xf32>
    %116 = vector.extract_strided_slice %111 {offsets = [0, 96], sizes = [2, 32], strides = [1, 1]} : vector<2x128xf32> to vector<2x32xf32>
    %117 = arith.mulf %114, %99 : vector<2x32xf32>
    %118 = arith.mulf %113, %115 : vector<2x32xf32>
    %119 = arith.addf %117, %118 : vector<2x32xf32>
    %120 = math.tanh %119 : vector<2x32xf32>
    %121 = arith.mulf %116, %120 : vector<2x32xf32>
    %122 = vector.extract_strided_slice %24 {offsets = [0, 2], sizes = [2, 1], strides = [1, 1]} : vector<2x8xf32> to vector<2x1xf32>
    %123 = vector.broadcast %122 : vector<2x1xf32> to vector<2x32xf32>
    %124 = arith.mulf %123, %121 : vector<2x32xf32>
    %cst_37 = arith.constant 1.000000e+00 : f32
    %125 = vector.broadcast %cst_37 : f32 to vector<2x1xf32>
    %126 = arith.subf %125, %122 : vector<2x1xf32>
    %127 = vector.broadcast %126 : vector<2x1xf32> to vector<2x32xf32>
    %128 = arith.mulf %127, %92 : vector<2x32xf32>
    %129 = arith.addf %124, %128 : vector<2x32xf32>
    %130 = vector.broadcast %122 : vector<2x1xf32> to vector<2x32xf32>
    %131 = arith.mulf %130, %119 : vector<2x32xf32>
    %cst_38 = arith.constant 1.000000e+00 : f32
    %132 = vector.broadcast %cst_38 : f32 to vector<2x1xf32>
    %133 = arith.subf %132, %122 : vector<2x1xf32>
    %134 = vector.broadcast %133 : vector<2x1xf32> to vector<2x32xf32>
    %135 = arith.mulf %134, %99 : vector<2x32xf32>
    %136 = arith.addf %131, %135 : vector<2x32xf32>
    %137 = vector.broadcast %122 : vector<2x1xf32> to vector<2x32xf32>
    %138 = arith.mulf %137, %121 : vector<2x32xf32>
    %139 = arith.addf %102, %138 : vector<2x32xf32>
    %140 = vector.extract_strided_slice %23 {offsets = [0, 3, 0], sizes = [2, 1, 128], strides = [1, 1, 1]} : vector<2x8x128xf32> to vector<2x1x128xf32>
    %141 = vector.shape_cast %140 : vector<2x1x128xf32> to vector<2x128xf32>
    %cst_39 = arith.constant dense<0.000000e+00> : vector<2x128xf32>
    %142 = tpu.matmul %129, %25, %cst_39 {dimension_numbers = #tpu.dot_dimension_numbers<[1], [0], [0], [1], [0, 0, 1, 1], [], []>} : vector<2x32xf32>, vector<32x128xf32>, vector<2x128xf32> -> vector<2x128xf32>
    %143 = arith.addf %141, %142 : vector<2x128xf32>
    %144 = arith.negf %143 : vector<2x128xf32>
    %145 = math.exp %144 : vector<2x128xf32>
    %cst_40 = arith.constant 1.000000e+00 : f32
    %146 = vector.broadcast %cst_40 : f32 to vector<2x128xf32>
    %147 = arith.addf %146, %145 : vector<2x128xf32>
    %148 = arith.divf %146, %147 : vector<2x128xf32>
    %149 = math.tanh %143 : vector<2x128xf32>
    %150 = vector.extract_strided_slice %148 {offsets = [0, 0], sizes = [2, 32], strides = [1, 1]} : vector<2x128xf32> to vector<2x32xf32>
    %151 = vector.extract_strided_slice %148 {offsets = [0, 32], sizes = [2, 32], strides = [1, 1]} : vector<2x128xf32> to vector<2x32xf32>
    %152 = vector.extract_strided_slice %149 {offsets = [0, 64], sizes = [2, 32], strides = [1, 1]} : vector<2x128xf32> to vector<2x32xf32>
    %153 = vector.extract_strided_slice %148 {offsets = [0, 96], sizes = [2, 32], strides = [1, 1]} : vector<2x128xf32> to vector<2x32xf32>
    %154 = arith.mulf %151, %136 : vector<2x32xf32>
    %155 = arith.mulf %150, %152 : vector<2x32xf32>
    %156 = arith.addf %154, %155 : vector<2x32xf32>
    %157 = math.tanh %156 : vector<2x32xf32>
    %158 = arith.mulf %153, %157 : vector<2x32xf32>
    %159 = vector.extract_strided_slice %24 {offsets = [0, 3], sizes = [2, 1], strides = [1, 1]} : vector<2x8xf32> to vector<2x1xf32>
    %160 = vector.broadcast %159 : vector<2x1xf32> to vector<2x32xf32>
    %161 = arith.mulf %160, %158 : vector<2x32xf32>
    %cst_41 = arith.constant 1.000000e+00 : f32
    %162 = vector.broadcast %cst_41 : f32 to vector<2x1xf32>
    %163 = arith.subf %162, %159 : vector<2x1xf32>
    %164 = vector.broadcast %163 : vector<2x1xf32> to vector<2x32xf32>
    %165 = arith.mulf %164, %129 : vector<2x32xf32>
    %166 = arith.addf %161, %165 : vector<2x32xf32>
    %167 = vector.broadcast %159 : vector<2x1xf32> to vector<2x32xf32>
    %168 = arith.mulf %167, %156 : vector<2x32xf32>
    %cst_42 = arith.constant 1.000000e+00 : f32
    %169 = vector.broadcast %cst_42 : f32 to vector<2x1xf32>
    %170 = arith.subf %169, %159 : vector<2x1xf32>
    %171 = vector.broadcast %170 : vector<2x1xf32> to vector<2x32xf32>
    %172 = arith.mulf %171, %136 : vector<2x32xf32>
    %173 = arith.addf %168, %172 : vector<2x32xf32>
    %174 = vector.broadcast %159 : vector<2x1xf32> to vector<2x32xf32>
    %175 = arith.mulf %174, %158 : vector<2x32xf32>
    %176 = arith.addf %139, %175 : vector<2x32xf32>
    %177 = vector.extract_strided_slice %23 {offsets = [0, 4, 0], sizes = [2, 1, 128], strides = [1, 1, 1]} : vector<2x8x128xf32> to vector<2x1x128xf32>
    %178 = vector.shape_cast %177 : vector<2x1x128xf32> to vector<2x128xf32>
    %cst_43 = arith.constant dense<0.000000e+00> : vector<2x128xf32>
    %179 = tpu.matmul %166, %25, %cst_43 {dimension_numbers = #tpu.dot_dimension_numbers<[1], [0], [0], [1], [0, 0, 1, 1], [], []>} : vector<2x32xf32>, vector<32x128xf32>, vector<2x128xf32> -> vector<2x128xf32>
    %180 = arith.addf %178, %179 : vector<2x128xf32>
    %181 = arith.negf %180 : vector<2x128xf32>
    %182 = math.exp %181 : vector<2x128xf32>
    %cst_44 = arith.constant 1.000000e+00 : f32
    %183 = vector.broadcast %cst_44 : f32 to vector<2x128xf32>
    %184 = arith.addf %183, %182 : vector<2x128xf32>
    %185 = arith.divf %183, %184 : vector<2x128xf32>
    %186 = math.tanh %180 : vector<2x128xf32>
    %187 = vector.extract_strided_slice %185 {offsets = [0, 0], sizes = [2, 32], strides = [1, 1]} : vector<2x128xf32> to vector<2x32xf32>
    %188 = vector.extract_strided_slice %185 {offsets = [0, 32], sizes = [2, 32], strides = [1, 1]} : vector<2x128xf32> to vector<2x32xf32>
    %189 = vector.extract_strided_slice %186 {offsets = [0, 64], sizes = [2, 32], strides = [1, 1]} : vector<2x128xf32> to vector<2x32xf32>
    %190 = vector.extract_strided_slice %185 {offsets = [0, 96], sizes = [2, 32], strides = [1, 1]} : vector<2x128xf32> to vector<2x32xf32>
    %191 = arith.mulf %188, %173 : vector<2x32xf32>
    %192 = arith.mulf %187, %189 : vector<2x32xf32>
    %193 = arith.addf %191, %192 : vector<2x32xf32>
    %194 = math.tanh %193 : vector<2x32xf32>
    %195 = arith.mulf %190, %194 : vector<2x32xf32>
    %196 = vector.extract_strided_slice %24 {offsets = [0, 4], sizes = [2, 1], strides = [1, 1]} : vector<2x8xf32> to vector<2x1xf32>
    %197 = vector.broadcast %196 : vector<2x1xf32> to vector<2x32xf32>
    %198 = arith.mulf %197, %195 : vector<2x32xf32>
    %cst_45 = arith.constant 1.000000e+00 : f32
    %199 = vector.broadcast %cst_45 : f32 to vector<2x1xf32>
    %200 = arith.subf %199, %196 : vector<2x1xf32>
    %201 = vector.broadcast %200 : vector<2x1xf32> to vector<2x32xf32>
    %202 = arith.mulf %201, %166 : vector<2x32xf32>
    %203 = arith.addf %198, %202 : vector<2x32xf32>
    %204 = vector.broadcast %196 : vector<2x1xf32> to vector<2x32xf32>
    %205 = arith.mulf %204, %193 : vector<2x32xf32>
    %cst_46 = arith.constant 1.000000e+00 : f32
    %206 = vector.broadcast %cst_46 : f32 to vector<2x1xf32>
    %207 = arith.subf %206, %196 : vector<2x1xf32>
    %208 = vector.broadcast %207 : vector<2x1xf32> to vector<2x32xf32>
    %209 = arith.mulf %208, %173 : vector<2x32xf32>
    %210 = arith.addf %205, %209 : vector<2x32xf32>
    %211 = vector.broadcast %196 : vector<2x1xf32> to vector<2x32xf32>
    %212 = arith.mulf %211, %195 : vector<2x32xf32>
    %213 = arith.addf %176, %212 : vector<2x32xf32>
    %214 = vector.extract_strided_slice %23 {offsets = [0, 5, 0], sizes = [2, 1, 128], strides = [1, 1, 1]} : vector<2x8x128xf32> to vector<2x1x128xf32>
    %215 = vector.shape_cast %214 : vector<2x1x128xf32> to vector<2x128xf32>
    %cst_47 = arith.constant dense<0.000000e+00> : vector<2x128xf32>
    %216 = tpu.matmul %203, %25, %cst_47 {dimension_numbers = #tpu.dot_dimension_numbers<[1], [0], [0], [1], [0, 0, 1, 1], [], []>} : vector<2x32xf32>, vector<32x128xf32>, vector<2x128xf32> -> vector<2x128xf32>
    %217 = arith.addf %215, %216 : vector<2x128xf32>
    %218 = arith.negf %217 : vector<2x128xf32>
    %219 = math.exp %218 : vector<2x128xf32>
    %cst_48 = arith.constant 1.000000e+00 : f32
    %220 = vector.broadcast %cst_48 : f32 to vector<2x128xf32>
    %221 = arith.addf %220, %219 : vector<2x128xf32>
    %222 = arith.divf %220, %221 : vector<2x128xf32>
    %223 = math.tanh %217 : vector<2x128xf32>
    %224 = vector.extract_strided_slice %222 {offsets = [0, 0], sizes = [2, 32], strides = [1, 1]} : vector<2x128xf32> to vector<2x32xf32>
    %225 = vector.extract_strided_slice %222 {offsets = [0, 32], sizes = [2, 32], strides = [1, 1]} : vector<2x128xf32> to vector<2x32xf32>
    %226 = vector.extract_strided_slice %223 {offsets = [0, 64], sizes = [2, 32], strides = [1, 1]} : vector<2x128xf32> to vector<2x32xf32>
    %227 = vector.extract_strided_slice %222 {offsets = [0, 96], sizes = [2, 32], strides = [1, 1]} : vector<2x128xf32> to vector<2x32xf32>
    %228 = arith.mulf %225, %210 : vector<2x32xf32>
    %229 = arith.mulf %224, %226 : vector<2x32xf32>
    %230 = arith.addf %228, %229 : vector<2x32xf32>
    %231 = math.tanh %230 : vector<2x32xf32>
    %232 = arith.mulf %227, %231 : vector<2x32xf32>
    %233 = vector.extract_strided_slice %24 {offsets = [0, 5], sizes = [2, 1], strides = [1, 1]} : vector<2x8xf32> to vector<2x1xf32>
    %234 = vector.broadcast %233 : vector<2x1xf32> to vector<2x32xf32>
    %235 = arith.mulf %234, %232 : vector<2x32xf32>
    %cst_49 = arith.constant 1.000000e+00 : f32
    %236 = vector.broadcast %cst_49 : f32 to vector<2x1xf32>
    %237 = arith.subf %236, %233 : vector<2x1xf32>
    %238 = vector.broadcast %237 : vector<2x1xf32> to vector<2x32xf32>
    %239 = arith.mulf %238, %203 : vector<2x32xf32>
    %240 = arith.addf %235, %239 : vector<2x32xf32>
    %241 = vector.broadcast %233 : vector<2x1xf32> to vector<2x32xf32>
    %242 = arith.mulf %241, %230 : vector<2x32xf32>
    %cst_50 = arith.constant 1.000000e+00 : f32
    %243 = vector.broadcast %cst_50 : f32 to vector<2x1xf32>
    %244 = arith.subf %243, %233 : vector<2x1xf32>
    %245 = vector.broadcast %244 : vector<2x1xf32> to vector<2x32xf32>
    %246 = arith.mulf %245, %210 : vector<2x32xf32>
    %247 = arith.addf %242, %246 : vector<2x32xf32>
    %248 = vector.broadcast %233 : vector<2x1xf32> to vector<2x32xf32>
    %249 = arith.mulf %248, %232 : vector<2x32xf32>
    %250 = arith.addf %213, %249 : vector<2x32xf32>
    %251 = vector.extract_strided_slice %23 {offsets = [0, 6, 0], sizes = [2, 1, 128], strides = [1, 1, 1]} : vector<2x8x128xf32> to vector<2x1x128xf32>
    %252 = vector.shape_cast %251 : vector<2x1x128xf32> to vector<2x128xf32>
    %cst_51 = arith.constant dense<0.000000e+00> : vector<2x128xf32>
    %253 = tpu.matmul %240, %25, %cst_51 {dimension_numbers = #tpu.dot_dimension_numbers<[1], [0], [0], [1], [0, 0, 1, 1], [], []>} : vector<2x32xf32>, vector<32x128xf32>, vector<2x128xf32> -> vector<2x128xf32>
    %254 = arith.addf %252, %253 : vector<2x128xf32>
    %255 = arith.negf %254 : vector<2x128xf32>
    %256 = math.exp %255 : vector<2x128xf32>
    %cst_52 = arith.constant 1.000000e+00 : f32
    %257 = vector.broadcast %cst_52 : f32 to vector<2x128xf32>
    %258 = arith.addf %257, %256 : vector<2x128xf32>
    %259 = arith.divf %257, %258 : vector<2x128xf32>
    %260 = math.tanh %254 : vector<2x128xf32>
    %261 = vector.extract_strided_slice %259 {offsets = [0, 0], sizes = [2, 32], strides = [1, 1]} : vector<2x128xf32> to vector<2x32xf32>
    %262 = vector.extract_strided_slice %259 {offsets = [0, 32], sizes = [2, 32], strides = [1, 1]} : vector<2x128xf32> to vector<2x32xf32>
    %263 = vector.extract_strided_slice %260 {offsets = [0, 64], sizes = [2, 32], strides = [1, 1]} : vector<2x128xf32> to vector<2x32xf32>
    %264 = vector.extract_strided_slice %259 {offsets = [0, 96], sizes = [2, 32], strides = [1, 1]} : vector<2x128xf32> to vector<2x32xf32>
    %265 = arith.mulf %262, %247 : vector<2x32xf32>
    %266 = arith.mulf %261, %263 : vector<2x32xf32>
    %267 = arith.addf %265, %266 : vector<2x32xf32>
    %268 = math.tanh %267 : vector<2x32xf32>
    %269 = arith.mulf %264, %268 : vector<2x32xf32>
    %270 = vector.extract_strided_slice %24 {offsets = [0, 6], sizes = [2, 1], strides = [1, 1]} : vector<2x8xf32> to vector<2x1xf32>
    %271 = vector.broadcast %270 : vector<2x1xf32> to vector<2x32xf32>
    %272 = arith.mulf %271, %269 : vector<2x32xf32>
    %cst_53 = arith.constant 1.000000e+00 : f32
    %273 = vector.broadcast %cst_53 : f32 to vector<2x1xf32>
    %274 = arith.subf %273, %270 : vector<2x1xf32>
    %275 = vector.broadcast %274 : vector<2x1xf32> to vector<2x32xf32>
    %276 = arith.mulf %275, %240 : vector<2x32xf32>
    %277 = arith.addf %272, %276 : vector<2x32xf32>
    %278 = vector.broadcast %270 : vector<2x1xf32> to vector<2x32xf32>
    %279 = arith.mulf %278, %267 : vector<2x32xf32>
    %cst_54 = arith.constant 1.000000e+00 : f32
    %280 = vector.broadcast %cst_54 : f32 to vector<2x1xf32>
    %281 = arith.subf %280, %270 : vector<2x1xf32>
    %282 = vector.broadcast %281 : vector<2x1xf32> to vector<2x32xf32>
    %283 = arith.mulf %282, %247 : vector<2x32xf32>
    %284 = arith.addf %279, %283 : vector<2x32xf32>
    %285 = vector.broadcast %270 : vector<2x1xf32> to vector<2x32xf32>
    %286 = arith.mulf %285, %269 : vector<2x32xf32>
    %287 = arith.addf %250, %286 : vector<2x32xf32>
    %288 = vector.extract_strided_slice %23 {offsets = [0, 7, 0], sizes = [2, 1, 128], strides = [1, 1, 1]} : vector<2x8x128xf32> to vector<2x1x128xf32>
    %289 = vector.shape_cast %288 : vector<2x1x128xf32> to vector<2x128xf32>
    %cst_55 = arith.constant dense<0.000000e+00> : vector<2x128xf32>
    %290 = tpu.matmul %277, %25, %cst_55 {dimension_numbers = #tpu.dot_dimension_numbers<[1], [0], [0], [1], [0, 0, 1, 1], [], []>} : vector<2x32xf32>, vector<32x128xf32>, vector<2x128xf32> -> vector<2x128xf32>
    %291 = arith.addf %289, %290 : vector<2x128xf32>
    %292 = arith.negf %291 : vector<2x128xf32>
    %293 = math.exp %292 : vector<2x128xf32>
    %cst_56 = arith.constant 1.000000e+00 : f32
    %294 = vector.broadcast %cst_56 : f32 to vector<2x128xf32>
    %295 = arith.addf %294, %293 : vector<2x128xf32>
    %296 = arith.divf %294, %295 : vector<2x128xf32>
    %297 = math.tanh %291 : vector<2x128xf32>
    %298 = vector.extract_strided_slice %296 {offsets = [0, 0], sizes = [2, 32], strides = [1, 1]} : vector<2x128xf32> to vector<2x32xf32>
    %299 = vector.extract_strided_slice %296 {offsets = [0, 32], sizes = [2, 32], strides = [1, 1]} : vector<2x128xf32> to vector<2x32xf32>
    %300 = vector.extract_strided_slice %297 {offsets = [0, 64], sizes = [2, 32], strides = [1, 1]} : vector<2x128xf32> to vector<2x32xf32>
    %301 = vector.extract_strided_slice %296 {offsets = [0, 96], sizes = [2, 32], strides = [1, 1]} : vector<2x128xf32> to vector<2x32xf32>
    %302 = arith.mulf %299, %284 : vector<2x32xf32>
    %303 = arith.mulf %298, %300 : vector<2x32xf32>
    %304 = arith.addf %302, %303 : vector<2x32xf32>
    %305 = math.tanh %304 : vector<2x32xf32>
    %306 = arith.mulf %301, %305 : vector<2x32xf32>
    %307 = vector.extract_strided_slice %24 {offsets = [0, 7], sizes = [2, 1], strides = [1, 1]} : vector<2x8xf32> to vector<2x1xf32>
    %308 = vector.broadcast %307 : vector<2x1xf32> to vector<2x32xf32>
    %309 = arith.mulf %308, %306 : vector<2x32xf32>
    %310 = arith.addf %287, %309 : vector<2x32xf32>
    %c0_57 = arith.constant 0 : index
    %c0_58 = arith.constant 0 : index
    %311 = vector.load %arg10[%c0_57, %c0_58] : memref<32x5xf32, #tpu.memory_space<vmem>>, vector<32x5xf32>
    %cst_59 = arith.constant dense<0.000000e+00> : vector<2x5xf32>
    %312 = tpu.matmul %310, %311, %cst_59 {dimension_numbers = #tpu.dot_dimension_numbers<[1], [0], [0], [1], [0, 0, 1, 1], [], []>} : vector<2x32xf32>, vector<32x5xf32>, vector<2x5xf32> -> vector<2x5xf32>
    %c0_60 = arith.constant 0 : index
    %c0_61 = arith.constant 0 : index
    %313 = vector.load %arg11[%c0_60, %c0_61] : memref<1x5xf32, #tpu.memory_space<vmem>>, vector<1x5xf32>
    %314 = vector.broadcast %313 : vector<1x5xf32> to vector<2x5xf32>
    %315 = arith.addf %312, %314 : vector<2x5xf32>
    %c0_62 = arith.constant 0 : index
    %c0_63 = arith.constant 0 : index
    %316 = vector.load %arg12[%c0_62, %c0_63] : memref<2x5xf32, #tpu.memory_space<vmem>>, vector<2x5xf32>
    tpu.vector_store %arg12[%c0_62, %c0_63], %315 {strides = array<i32>} : memref<2x5xf32, #tpu.memory_space<vmem>>, vector<2x5xf32>,
    return
  }
  func.func @transform_0(%arg0: i32) -> (i32, i32, i32) {
    %c0_i32 = arith.constant 0 : i32
    %c0_i32_0 = arith.constant 0 : i32
    %c0_i32_1 = arith.constant 0 : i32
    %c0_i32_2 = arith.constant 0 : i32
    return %c0_i32, %c0_i32_0, %c0_i32_1 : i32, i32, i32
  }
  func.func @transform_1(%arg0: i32) -> (i32, i32) {
    %c0_i32 = arith.constant 0 : i32
    %c0_i32_0 = arith.constant 0 : i32
    %c0_i32_1 = arith.constant 0 : i32
    return %c0_i32, %c0_i32_0 : i32, i32
  }
  func.func @transform_2(%arg0: i32) -> (i32, i32) {
    %c0_i32 = arith.constant 0 : i32
    %c0_i32_0 = arith.constant 0 : i32
    %c0_i32_1 = arith.constant 0 : i32
    return %c0_i32, %c0_i32_0 : i32, i32
  }
  func.func @transform_3(%arg0: i32) -> (i32, i32) {
    %c0_i32 = arith.constant 0 : i32
    %c0_i32_0 = arith.constant 0 : i32
    %c0_i32_1 = arith.constant 0 : i32
    return %c0_i32, %c0_i32_0 : i32, i32
  }
  func.func @transform_4(%arg0: i32) -> (i32, i32) {
    %c0_i32 = arith.constant 0 : i32
    %c0_i32_0 = arith.constant 0 : i32
    %c0_i32_1 = arith.constant 0 : i32
    return %c0_i32, %c0_i32_0 : i32, i32
  }
  func.func @transform_5(%arg0: i32) -> (i32, i32) {
    %c0_i32 = arith.constant 0 : i32
    %c0_i32_0 = arith.constant 0 : i32
    %c0_i32_1 = arith.constant 0 : i32
    return %c0_i32, %c0_i32_0 : i32, i32
  }
  func.func @transform_6(%arg0: i32) -> (i32, i32) {
    %c0_i32 = arith.constant 0 : i32
    %c0_i32_0 = arith.constant 0 : i32
    %c0_i32_1 = arith.constant 0 : i32
    return %c0_i32, %c0_i32_0 : i32, i32
  }
  func.func @transform_7(%arg0: i32) -> (i32, i32) {
    %c0_i32 = arith.constant 0 : i32
    %c0_i32_0 = arith.constant 0 : i32
    %c0_i32_1 = arith.constant 0 : i32
    return %c0_i32, %c0_i32_0 : i32, i32
  }
  func.func @transform_8(%arg0: i32) -> (i32, i32) {
    %c0_i32 = arith.constant 0 : i32
    %c0_i32_0 = arith.constant 0 : i32
    %c0_i32_1 = arith.constant 0 : i32
    return %c0_i32, %c0_i32_0 : i32, i32
  }
  func.func @transform_9(%arg0: i32) -> (i32, i32) {
    %c0_i32 = arith.constant 0 : i32
    %c0_i32_0 = arith.constant 0 : i32
    %c0_i32_1 = arith.constant 0 : i32
    return %c0_i32, %c0_i32_0 : i32, i32
  }
  func.func @transform_10(%arg0: i32) -> (i32, i32) {
    %c0_i32 = arith.constant 0 : i32
    %c0_i32_0 = arith.constant 0 : i32
    %c0_i32_1 = arith.constant 0 : i32
    return %c0_i32, %c0_i32_0 : i32, i32
  }
  func.func @transform_11(%arg0: i32) -> (i32, i32) {
    %c0_i32 = arith.constant 0 : i32
    %c0_i32_0 = arith.constant 0 : i32
    %c0_i32_1 = arith.constant 0 : i32
    return %c0_i32, %c0_i32_0 : i32, i32
  }
}

</mosaic_0001>

<llo_original>
// kernel: tpu_custom_call.1
$region0: #{tpu_custom_call.1}
  #allocation0 [shape = 'u32[]', space=smem, size = 0x4, offset = 0x4, fixed_abs, tag = 'smem constant byte address 0x4 - core index']
  #allocation1 [shape = 'u32[144,128]{1,0:T(1,128)}', space=vmem, size = 0x12000, scoped, tag = 'internal scratch']
  %s0 = inlined_call_operand.vmem [shape: f32[16,3,256], index: 0, kind: input, shape index: {}]
  %s1 = inlined_call_operand.vmem [shape: f32[2,8], index: 1, kind: input, shape index: {}]
  %s2 = inlined_call_operand.vmem [shape: f32[3,512], index: 2, kind: input, shape index: {}]
  %s3 = inlined_call_operand.vmem [shape: f32[1,512], index: 3, kind: input, shape index: {}]
  %s4 = inlined_call_operand.vmem [shape: f32[512,32], index: 4, kind: input, shape index: {}]
  %s5 = inlined_call_operand.vmem [shape: f32[1,32], index: 5, kind: input, shape index: {}]
  %s6 = inlined_call_operand.vmem [shape: f32[32,128], index: 6, kind: input, shape index: {}]
  %s7 = inlined_call_operand.vmem [shape: f32[1,128], index: 7, kind: input, shape index: {}]
  %s8 = inlined_call_operand.vmem [shape: f32[32,128], index: 8, kind: input, shape index: {}]
  %s9 = inlined_call_operand.vmem [shape: f32[32,5], index: 9, kind: input, shape index: {}]
  %s10 = inlined_call_operand.vmem [shape: f32[1,5], index: 10, kind: input, shape index: {}]
  %s11 = inlined_call_operand.hbm [shape: f32[2,5], index: 11, kind: output, shape index: {}]
  %s12 = sld [smem:[#allocation0]]
  $region54: #{tpu_custom_call.1} parent=0
    _
  %s14 = ssub.s32 1, %s12
  %s15 = scalar_select 0, %s14, %s12
  $region1: #{tpu_custom_call.1} parent=0
    #allocation2 [shape = 'u8[1024]{0}', space=vmem, size = 0x400, scoped, tag = 'output window, operand 0, single buffered']
    #allocation3 [shape = 's32[1]{0}', space=sflag, size = 0x4, scoped, tag = 'scoped memory for tpu_custom_call.1']
    %16 = vsyncpa [#allocation3], 0
    // Predicated region
    $region2: #{tpu_custom_call.1} parent=1 // pred_check
      _
    $region3: #{tpu_custom_call.1} parent=1 // pred_check_branch
      %18 = sbr.rel (0) target = $region5
    $region4: #{tpu_custom_call.1} parent=1 // pred_region
      _
    $region5: #{tpu_custom_call.1} parent=1 // pred_fallthru
      _
    // Predicated region
    $region6: #{tpu_custom_call.1} parent=1 // pred_check
      _
    $region7: #{tpu_custom_call.1} parent=1 // pred_check_branch
      %20 = sbr.rel (0) target = $region9
    $region8: #{tpu_custom_call.1} parent=1 // pred_region
      _
    $region9: #{tpu_custom_call.1} parent=1 // pred_fallthru
      _
    // Predicated region
    $region10: #{tpu_custom_call.1} parent=1 // pred_check
      _
    $region11: #{tpu_custom_call.1} parent=1 // pred_check_branch
      %22 = sbr.rel (0) target = $region13
    $region12: #{tpu_custom_call.1} parent=1 // pred_region
      _
    $region13: #{tpu_custom_call.1} parent=1 // pred_fallthru
      _
    // Predicated region
    $region14: #{tpu_custom_call.1} parent=1 // pred_check
      _
    $region15: #{tpu_custom_call.1} parent=1 // pred_check_branch
      %24 = sbr.rel (0) target = $region17
    $region16: #{tpu_custom_call.1} parent=1 // pred_region
      _
    $region17: #{tpu_custom_call.1} parent=1 // pred_fallthru
      _
    // Predicated region
    $region18: #{tpu_custom_call.1} parent=1 // pred_check
      _
    $region19: #{tpu_custom_call.1} parent=1 // pred_check_branch
      %26 = sbr.rel (0) target = $region21
    $region20: #{tpu_custom_call.1} parent=1 // pred_region
      _
    $region21: #{tpu_custom_call.1} parent=1 // pred_fallthru
      _
    // Predicated region
    $region22: #{tpu_custom_call.1} parent=1 // pred_check
      _
    $region23: #{tpu_custom_call.1} parent=1 // pred_check_branch
      %28 = sbr.rel (0) target = $region25
    $region24: #{tpu_custom_call.1} parent=1 // pred_region
      _
    $region25: #{tpu_custom_call.1} parent=1 // pred_fallthru
      _
    // Predicated region
    $region26: #{tpu_custom_call.1} parent=1 // pred_check
      _
    $region27: #{tpu_custom_call.1} parent=1 // pred_check_branch
      %30 = sbr.rel (0) target = $region29
    $region28: #{tpu_custom_call.1} parent=1 // pred_region
      _
    $region29: #{tpu_custom_call.1} parent=1 // pred_fallthru
      _
    // Predicated region
    $region30: #{tpu_custom_call.1} parent=1 // pred_check
      _
    $region31: #{tpu_custom_call.1} parent=1 // pred_check_branch
      %32 = sbr.rel (0) target = $region33
    $region32: #{tpu_custom_call.1} parent=1 // pred_region
      _
    $region33: #{tpu_custom_call.1} parent=1 // pred_fallthru
      _
    // Predicated region
    $region34: #{tpu_custom_call.1} parent=1 // pred_check
      _
    $region35: #{tpu_custom_call.1} parent=1 // pred_check_branch
      %34 = sbr.rel (0) target = $region37
    $region36: #{tpu_custom_call.1} parent=1 // pred_region
      _
    $region37: #{tpu_custom_call.1} parent=1 // pred_fallthru
      _
    // Predicated region
    $region38: #{tpu_custom_call.1} parent=1 // pred_check
      _
    $region39: #{tpu_custom_call.1} parent=1 // pred_check_branch
      %36 = sbr.rel (0) target = $region41
    $region40: #{tpu_custom_call.1} parent=1 // pred_region
      _
    $region41: #{tpu_custom_call.1} parent=1 // pred_fallthru
      _
    // Predicated region
    $region42: #{tpu_custom_call.1} parent=1 // pred_check
      _
    $region43: #{tpu_custom_call.1} parent=1 // pred_check_branch
      %38 = sbr.rel (0) target = $region45
    $region44: #{tpu_custom_call.1} parent=1 // pred_region
      _
    $region45: #{tpu_custom_call.1} parent=1 // pred_fallthru
      _
    %v39 = vld [vmem:[%s0] sm:$0x77]
    %v40 = vld [vmem:[%s0 + $0x8] sm:$0x77]
    %v41 = vld [vmem:[%s0 + $0x10] sm:$0x77]
    %v42 = vld [vmem:[%s0 + $0x18] sm:$0x77]
    %v43 = vld [vmem:[%s0 + $0x20] sm:$0x77]
    %v44 = vld [vmem:[%s0 + $0x28] sm:$0x77]
    %v45 = vld [vmem:[%s0 + $0x30] sm:$0x77]
    %v46 = vld [vmem:[%s0 + $0x38] sm:$0x77]
    %v47 = vld [vmem:[%s0 + $0x40] sm:$0x77]
    %v48 = vld [vmem:[%s0 + $0x48] sm:$0x77]
    %v49 = vld [vmem:[%s0 + $0x50] sm:$0x77]
    %v50 = vld [vmem:[%s0 + $0x58] sm:$0x77]
    %v51 = vld [vmem:[%s0 + $0x60] sm:$0x77]
    %v52 = vld [vmem:[%s0 + $0x68] sm:$0x77]
    %v53 = vld [vmem:[%s0 + $0x70] sm:$0x77]
    %v54 = vld [vmem:[%s0 + $0x78] sm:$0x77]
    %v71 = vcombine.high %v39, %v39
    %v72 = vcombine.high %v40, %v40
    %v73 = vcombine.high %v41, %v41
    %v74 = vcombine.high %v42, %v42
    %v75 = vcombine.high %v43, %v43
    %v76 = vcombine.high %v44, %v44
    %v77 = vcombine.high %v45, %v45
    %v78 = vcombine.high %v46, %v46
    %v79 = vcombine.high %v47, %v47
    %v80 = vcombine.high %v48, %v48
    %v81 = vcombine.high %v49, %v49
    %v82 = vcombine.high %v50, %v50
    %v83 = vcombine.high %v51, %v51
    %v84 = vcombine.high %v52, %v52
    %v85 = vcombine.high %v53, %v53
    %v86 = vcombine.high %v54, %v54
    %vm103 = vcmask 1042432
    %v104 = vsel %vm103, %v39, 0.0
    %v105 = vsel %vm103, %v71, 0.0
    %v106 = vadd.f32 %v104, %v105
    %107 = vadd.xlane.f32.xlu0 %v106
    %v108 = vpop.xlane.xlu0 %107
    %v109 = vsel %vm103, %v40, 0.0
    %v110 = vsel %vm103, %v72, 0.0
    %v111 = vadd.f32 %v109, %v110
    %112 = vadd.xlane.f32.xlu0 %v111
    %v113 = vpop.xlane.xlu0 %112
    %v114 = vsel %vm103, %v41, 0.0
    %v115 = vsel %vm103, %v73, 0.0
    %v116 = vadd.f32 %v114, %v115
    %117 = vadd.xlane.f32.xlu0 %v116
    %v118 = vpop.xlane.xlu0 %117
    %v119 = vsel %vm103, %v42, 0.0
    %v120 = vsel %vm103, %v74, 0.0
    %v121 = vadd.f32 %v119, %v120
    %122 = vadd.xlane.f32.xlu0 %v121
    %v123 = vpop.xlane.xlu0 %122
    %v124 = vsel %vm103, %v43, 0.0
    %v125 = vsel %vm103, %v75, 0.0
    %v126 = vadd.f32 %v124, %v125
    %127 = vadd.xlane.f32.xlu0 %v126
    %v128 = vpop.xlane.xlu0 %127
    %v129 = vsel %vm103, %v44, 0.0
    %v130 = vsel %vm103, %v76, 0.0
    %v131 = vadd.f32 %v129, %v130
    %132 = vadd.xlane.f32.xlu0 %v131
    %v133 = vpop.xlane.xlu0 %132
    %v134 = vsel %vm103, %v45, 0.0
    %v135 = vsel %vm103, %v77, 0.0
    %v136 = vadd.f32 %v134, %v135
    %137 = vadd.xlane.f32.xlu0 %v136
    %v138 = vpop.xlane.xlu0 %137
    %v139 = vsel %vm103, %v46, 0.0
    %v140 = vsel %vm103, %v78, 0.0
    %v141 = vadd.f32 %v139, %v140
    %142 = vadd.xlane.f32.xlu0 %v141
    %v143 = vpop.xlane.xlu0 %142
    %v144 = vsel %vm103, %v47, 0.0
    %v145 = vsel %vm103, %v79, 0.0
    %v146 = vadd.f32 %v144, %v145
    %147 = vadd.xlane.f32.xlu0 %v146
    %v148 = vpop.xlane.xlu0 %147
    %v149 = vsel %vm103, %v48, 0.0
    %v150 = vsel %vm103, %v80, 0.0
    %v151 = vadd.f32 %v149, %v150
    %152 = vadd.xlane.f32.xlu0 %v151
    %v153 = vpop.xlane.xlu0 %152
    %v154 = vsel %vm103, %v49, 0.0
    %v155 = vsel %vm103, %v81, 0.0
    %v156 = vadd.f32 %v154, %v155
    %157 = vadd.xlane.f32.xlu0 %v156
    %v158 = vpop.xlane.xlu0 %157
    %v159 = vsel %vm103, %v50, 0.0
    %v160 = vsel %vm103, %v82, 0.0
    %v161 = vadd.f32 %v159, %v160
    %162 = vadd.xlane.f32.xlu0 %v161
    %v163 = vpop.xlane.xlu0 %162
    %v164 = vsel %vm103, %v51, 0.0
    %v165 = vsel %vm103, %v83, 0.0
    %v166 = vadd.f32 %v164, %v165
    %167 = vadd.xlane.f32.xlu0 %v166
    %v168 = vpop.xlane.xlu0 %167
    %v169 = vsel %vm103, %v52, 0.0
    %v170 = vsel %vm103, %v84, 0.0
    %v171 = vadd.f32 %v169, %v170
    %172 = vadd.xlane.f32.xlu0 %v171
    %v173 = vpop.xlane.xlu0 %172
    %v174 = vsel %vm103, %v53, 0.0
    %v175 = vsel %vm103, %v85, 0.0
    %v176 = vadd.f32 %v174, %v175
    %177 = vadd.xlane.f32.xlu0 %v176
    %v178 = vpop.xlane.xlu0 %177
    %v179 = vsel %vm103, %v54, 0.0
    %v180 = vsel %vm103, %v86, 0.0
    %v181 = vadd.f32 %v179, %v180
    %182 = vadd.xlane.f32.xlu0 %v181
    %v183 = vpop.xlane.xlu0 %182
    %v184 = vrcp.pop 256.0
    %v185 = vmul.f32 %v108, %v184
    %v186 = vmul.f32 %v113, %v184
    %v187 = vmul.f32 %v118, %v184
    %v188 = vmul.f32 %v123, %v184
    %v189 = vmul.f32 %v128, %v184
    %v190 = vmul.f32 %v133, %v184
    %v191 = vmul.f32 %v138, %v184
    %v192 = vmul.f32 %v143, %v184
    %v193 = vmul.f32 %v148, %v184
    %v194 = vmul.f32 %v153, %v184
    %v195 = vmul.f32 %v158, %v184
    %v196 = vmul.f32 %v163, %v184
    %v197 = vmul.f32 %v168, %v184
    %v198 = vmul.f32 %v173, %v184
    %v199 = vmul.f32 %v178, %v184
    %v200 = vmul.f32 %v183, %v184
    %v201 = vld [vmem:[%s2] sm:$0x77]
    %v202 = vld [vmem:[%s2 + $0x8] sm:$0x77]
    %v203 = vld [vmem:[%s3] sm:$0xf]
    %v205 = vlaneseq
    %v206 = vshrl.u32 %v205, 7
    %v207 = vsub.s32 0, %v206
    %v208 = vrot.slane %v203, %v207
    %v209 = vlaneseq
    %v210 = vshrl.u32 %v209, 7
    %v211 = vsub.s32 1, %v210
    %v212 = vrot.slane %v203, %v211
    %v213 = vlaneseq
    %v214 = vshrl.u32 %v213, 7
    %v215 = vsub.s32 2, %v214
    %v216 = vrot.slane %v203, %v215
    %v217 = vlaneseq
    %v218 = vshrl.u32 %v217, 7
    %v219 = vsub.s32 3, %v218
    %v220 = vrot.slane %v203, %v219
    %v241 = vlaneseq
    %v242 = vand.u32 %v241, 127
    %v243 = vlaneseq
    %v244 = vshrl.u32 %v243, 7
    %v245 = vsub.s32 %v242, %v244
    %v246 = vrot.slane %v185, %v245
    %v247 = vlaneseq
    %v248 = vshrl.u32 %v247, 7
    %v249 = vsub.s32 %v242, %v248
    %v250 = vrot.slane %v186, %v249
    %v251 = vlaneseq
    %v252 = vshrl.u32 %v251, 7
    %v253 = vsub.s32 %v242, %v252
    %v254 = vrot.slane %v187, %v253
    %v255 = vlaneseq
    %v256 = vshrl.u32 %v255, 7
    %v257 = vsub.s32 %v242, %v256
    %v258 = vrot.slane %v188, %v257
    %v259 = vlaneseq
    %v260 = vshrl.u32 %v259, 7
    %v261 = vsub.s32 %v242, %v260
    %v262 = vrot.slane %v189, %v261
    %v263 = vlaneseq
    %v264 = vshrl.u32 %v263, 7
    %v265 = vsub.s32 %v242, %v264
    %v266 = vrot.slane %v190, %v265
    %v267 = vlaneseq
    %v268 = vshrl.u32 %v267, 7
    %v269 = vsub.s32 %v242, %v268
    %v270 = vrot.slane %v191, %v269
    %v271 = vlaneseq
    %v272 = vshrl.u32 %v271, 7
    %v273 = vsub.s32 %v242, %v272
    %v274 = vrot.slane %v192, %v273
    %v275 = vlaneseq
    %v276 = vshrl.u32 %v275, 7
    %v277 = vsub.s32 %v242, %v276
    %v278 = vrot.slane %v193, %v277
    %v279 = vlaneseq
    %v280 = vshrl.u32 %v279, 7
    %v281 = vsub.s32 %v242, %v280
    %v282 = vrot.slane %v194, %v281
    %v283 = vlaneseq
    %v284 = vshrl.u32 %v283, 7
    %v285 = vsub.s32 %v242, %v284
    %v286 = vrot.slane %v195, %v285
    %v287 = vlaneseq
    %v288 = vshrl.u32 %v287, 7
    %v289 = vsub.s32 %v242, %v288
    %v290 = vrot.slane %v196, %v289
    %v291 = vlaneseq
    %v292 = vshrl.u32 %v291, 7
    %v293 = vsub.s32 %v242, %v292
    %v294 = vrot.slane %v197, %v293
    %v295 = vlaneseq
    %v296 = vshrl.u32 %v295, 7
    %v297 = vsub.s32 %v242, %v296
    %v298 = vrot.slane %v198, %v297
    %v299 = vlaneseq
    %v300 = vshrl.u32 %v299, 7
    %v301 = vsub.s32 %v242, %v300
    %v302 = vrot.slane %v199, %v301
    %v303 = vlaneseq
    %v304 = vshrl.u32 %v303, 7
    %v305 = vsub.s32 %v242, %v304
    %v306 = vrot.slane %v200, %v305
    %vm307 = vcmask 1041409
    %v308 = vsel %vm307, %v250, %v246
    %vm309 = vcmask 1042434
    %v310 = vsel %vm309, %v254, %v308
    %vm311 = vcmask 1043459
    %v312 = vsel %vm311, %v258, %v310
    %vm313 = vcmask 1044484
    %v314 = vsel %vm313, %v262, %v312
    %vm315 = vcmask 1045509
    %v316 = vsel %vm315, %v266, %v314
    %vm317 = vcmask 1046534
    %v318 = vsel %vm317, %v270, %v316
    %vm319 = vcmask 1047559
    %v320 = vsel %vm319, %v274, %v318
    %v321 = vsel %vm307, %v282, %v278
    %v322 = vsel %vm309, %v286, %v321
    %v323 = vsel %vm311, %v290, %v322
    %v324 = vsel %vm313, %v294, %v323
    %v325 = vsel %vm315, %v298, %v324
    %v326 = vsel %vm317, %v302, %v325
    %v327 = vsel %vm319, %v306, %v326
    %v330 = vcombine.high %v201, %v201
    %v331 = vcombine.high %v202, %v202
    %vm332 = vcmask 23552
    %v333 = vsel %vm332, %v320, 0
    %v335 = vsel %vm332, %v327, 0
    %v337 = vsel %vm103, %v201, 0
    %v339 = vsel %vm103, %v330, 0
    %v341 = vsel %vm103, %v202, 0
    %v343 = vsel %vm103, %v331, 0
    %345 = vmatprep.subr.mxu0 0.0
    %346 = vmatpush1.msra.mxu0 0.0
    %347 = vmatprep.subr.mxu0 0.0
    %348 = vmatpush1.msra.mxu0 0.0
    %349 = vmatprep.subr.mxu0 0.0
    %350 = vmatpush1.msra.mxu0 0.0
    %351 = vmatprep.subr.mxu0 0.0
    %352 = vmatpush1.msra.mxu0 0.0
    %353 = vmatprep.subr.mxu0 0.0
    %354 = vmatpush1.msra.mxu0 0.0
    %355 = vmatprep.subr.mxu0 0.0
    %356 = vmatpush1.msra.mxu0 0.0
    %357 = vmatprep.subr.mxu0 0.0
    %358 = vmatpush1.msra.mxu0 0.0
    %359 = vmatprep.subr.mxu0 0.0
    %360 = vmatpush1.msra.mxu0 0.0
    %361 = vmatprep.subr.mxu0 0.0
    %362 = vmatpush1.msra.mxu0 0.0
    %363 = vmatprep.subr.mxu0 0.0
    %364 = vmatpush1.msra.mxu0 0.0
    %365 = vmatprep.subr.mxu0 0.0
    %366 = vmatpush1.msra.mxu0 0.0
    %367 = vmatprep.subr.mxu0 0.0
    %368 = vmatpush1.msra.mxu0 0.0
    %369 = vmatprep.subr.mxu0 0.0
    %370 = vmatpush1.msra.mxu0 0.0
    %371 = vmatprep.subr.mxu0 0.0
    %372 = vmatpush1.msra.mxu0 0.0
    %373 = vmatprep.subr.mxu0 0.0
    %374 = vmatpush1.msra.mxu0 0.0
    %375 = vmatprep.subr.mxu0 %v339
    %376 = vmatpush1.msra.mxu0 %v337
    %377 = vmatprep.subr.mxu0 0.0
    %378 = vmatpush2.msra.mxu0 0.0
    %379 = vmatprep.subr.mxu0 0.0
    %380 = vmatpush2.msra.mxu0 0.0
    %381 = vmatprep.subr.mxu0 0.0
    %382 = vmatpush2.msra.mxu0 0.0
    %383 = vmatprep.subr.mxu0 0.0
    %384 = vmatpush2.msra.mxu0 0.0
    %385 = vmatprep.subr.mxu0 0.0
    %386 = vmatpush2.msra.mxu0 0.0
    %387 = vmatprep.subr.mxu0 0.0
    %388 = vmatpush2.msra.mxu0 0.0
    %389 = vmatprep.subr.mxu0 0.0
    %390 = vmatpush2.msra.mxu0 0.0
    %391 = vmatprep.subr.mxu0 0.0
    %392 = vmatpush2.msra.mxu0 0.0
    %393 = vmatprep.subr.mxu0 0.0
    %394 = vmatpush2.msra.mxu0 0.0
    %395 = vmatprep.subr.mxu0 0.0
    %396 = vmatpush2.msra.mxu0 0.0
    %397 = vmatprep.subr.mxu0 0.0
    %398 = vmatpush2.msra.mxu0 0.0
    %399 = vmatprep.subr.mxu0 0.0
    %400 = vmatpush2.msra.mxu0 0.0
    %401 = vmatprep.subr.mxu0 0.0
    %402 = vmatpush2.msra.mxu0 0.0
    %403 = vmatprep.subr.mxu0 0.0
    %404 = vmatpush2.msra.mxu0 0.0
    %405 = vmatprep.subr.mxu0 0.0
    %406 = vmatpush2.msra.mxu0 0.0
    %407 = vmatprep.subr.mxu0 0.0
    %408 = vmatpush2.msra.mxu0 0.0
    %409 = vmatprep.mubr.f32.mxu0 0.0
    %410 = vmatmul.mubr.f32.gmra.mxu0 %v333
    %v411 = vpop.f32.mrf.mxu0
    %v412 = vadd.f32 %v208, %v411
    %v413 = vpop.f32.mrf.mxu0
    %v414 = vadd.f32 %v212, %v413
    %415 = vmatprep.mubr.f32.mxu0 0.0
    %416 = vmatmul.mubr.f32.gmra.mxu0 %v335
    %v417 = vpop.f32.mrf.mxu0
    %v418 = vadd.f32 %v208, %v417
    %v419 = vpop.f32.mrf.mxu0
    %v420 = vadd.f32 %v212, %v419
    %421 = vdwg.mxu0
    %422 = vmatprep.subr.mxu0 0.0
    %423 = vmatpush1.msra.mxu0 0.0
    %424 = vmatprep.subr.mxu0 0.0
    %425 = vmatpush1.msra.mxu0 0.0
    %426 = vmatprep.subr.mxu0 0.0
    %427 = vmatpush1.msra.mxu0 0.0
    %428 = vmatprep.subr.mxu0 0.0
    %429 = vmatpush1.msra.mxu0 0.0
    %430 = vmatprep.subr.mxu0 0.0
    %431 = vmatpush1.msra.mxu0 0.0
    %432 = vmatprep.subr.mxu0 0.0
    %433 = vmatpush1.msra.mxu0 0.0
    %434 = vmatprep.subr.mxu0 0.0
    %435 = vmatpush1.msra.mxu0 0.0
    %436 = vmatprep.subr.mxu0 0.0
    %437 = vmatpush1.msra.mxu0 0.0
    %438 = vmatprep.subr.mxu0 0.0
    %439 = vmatpush1.msra.mxu0 0.0
    %440 = vmatprep.subr.mxu0 0.0
    %441 = vmatpush1.msra.mxu0 0.0
    %442 = vmatprep.subr.mxu0 0.0
    %443 = vmatpush1.msra.mxu0 0.0
    %444 = vmatprep.subr.mxu0 0.0
    %445 = vmatpush1.msra.mxu0 0.0
    %446 = vmatprep.subr.mxu0 0.0
    %447 = vmatpush1.msra.mxu0 0.0
    %448 = vmatprep.subr.mxu0 0.0
    %449 = vmatpush1.msra.mxu0 0.0
    %450 = vmatprep.subr.mxu0 0.0
    %451 = vmatpush1.msra.mxu0 0.0
    %452 = vmatprep.subr.mxu0 %v343
    %453 = vmatpush1.msra.mxu0 %v341
    %454 = vmatprep.subr.mxu0 0.0
    %455 = vmatpush2.msra.mxu0 0.0
    %456 = vmatprep.subr.mxu0 0.0
    %457 = vmatpush2.msra.mxu0 0.0
    %458 = vmatprep.subr.mxu0 0.0
    %459 = vmatpush2.msra.mxu0 0.0
    %460 = vmatprep.subr.mxu0 0.0
    %461 = vmatpush2.msra.mxu0 0.0
    %462 = vmatprep.subr.mxu0 0.0
    %463 = vmatpush2.msra.mxu0 0.0
    %464 = vmatprep.subr.mxu0 0.0
    %465 = vmatpush2.msra.mxu0 0.0
    %466 = vmatprep.subr.mxu0 0.0
    %467 = vmatpush2.msra.mxu0 0.0
    %468 = vmatprep.subr.mxu0 0.0
    %469 = vmatpush2.msra.mxu0 0.0
    %470 = vmatprep.subr.mxu0 0.0
    %471 = vmatpush2.msra.mxu0 0.0
    %472 = vmatprep.subr.mxu0 0.0
    %473 = vmatpush2.msra.mxu0 0.0
    %474 = vmatprep.subr.mxu0 0.0
    %475 = vmatpush2.msra.mxu0 0.0
    %476 = vmatprep.subr.mxu0 0.0
    %477 = vmatpush2.msra.mxu0 0.0
    %478 = vmatprep.subr.mxu0 0.0
    %479 = vmatpush2.msra.mxu0 0.0
    %480 = vmatprep.subr.mxu0 0.0
    %481 = vmatpush2.msra.mxu0 0.0
    %482 = vmatprep.subr.mxu0 0.0
    %483 = vmatpush2.msra.mxu0 0.0
    %484 = vmatprep.subr.mxu0 0.0
    %485 = vmatpush2.msra.mxu0 0.0
    %486 = vmatprep.mubr.f32.mxu0 0.0
    %487 = vmatmul.mubr.f32.gmra.mxu0 %v333
    %v488 = vpop.f32.mrf.mxu0
    %v489 = vadd.f32 %v216, %v488
    %v490 = vpop.f32.mrf.mxu0
    %v491 = vadd.f32 %v220, %v490
    %492 = vmatprep.mubr.f32.mxu0 0.0
    %493 = vmatmul.mubr.f32.gmra.mxu0 %v335
    %v494 = vpop.f32.mrf.mxu0
    %v495 = vadd.f32 %v216, %v494
    %v496 = vpop.f32.mrf.mxu0
    %v497 = vadd.f32 %v220, %v496
    %498 = vdwg.mxu0
    %v499 = vmax.f32 %v412, 0.0
    %v500 = vmax.f32 %v414, 0.0
    %v501 = vmax.f32 %v489, 0.0
    %v502 = vmax.f32 %v491, 0.0
    %v503 = vmax.f32 %v418, 0.0
    %v504 = vmax.f32 %v420, 0.0
    %v505 = vmax.f32 %v495, 0.0
    %v506 = vmax.f32 %v497, 0.0
    %v507 = vld [vmem:[%s4] sm:$0xff]
    %v508 = vld [vmem:[%s4 + $0x8] sm:$0xff]
    %v509 = vld [vmem:[%s4 + $0x10] sm:$0xff]
    %v510 = vld [vmem:[%s4 + $0x18] sm:$0xff]
    %v511 = vld [vmem:[%s4 + $0x20] sm:$0xff]
    %v512 = vld [vmem:[%s4 + $0x28] sm:$0xff]
    %v513 = vld [vmem:[%s4 + $0x30] sm:$0xff]
    %v514 = vld [vmem:[%s4 + $0x38] sm:$0xff]
    %v515 = vld [vmem:[%s4 + $0x40] sm:$0xff]
    %v516 = vld [vmem:[%s4 + $0x48] sm:$0xff]
    %v517 = vld [vmem:[%s4 + $0x50] sm:$0xff]
    %v518 = vld [vmem:[%s4 + $0x58] sm:$0xff]
    %v519 = vld [vmem:[%s4 + $0x60] sm:$0xff]
    %v520 = vld [vmem:[%s4 + $0x68] sm:$0xff]
    %v521 = vld [vmem:[%s4 + $0x70] sm:$0xff]
    %v522 = vld [vmem:[%s4 + $0x78] sm:$0xff]
    %v523 = vld [vmem:[%s4 + $0x80] sm:$0xff]
    %v524 = vld [vmem:[%s4 + $0x88] sm:$0xff]
    %v525 = vld [vmem:[%s4 + $0x90] sm:$0xff]
    %v526 = vld [vmem:[%s4 + $0x98] sm:$0xff]
    %v527 = vld [vmem:[%s4 + $0xa0] sm:$0xff]
    %v528 = vld [vmem:[%s4 + $0xa8] sm:$0xff]
    %v529 = vld [vmem:[%s4 + $0xb0] sm:$0xff]
    %v530 = vld [vmem:[%s4 + $0xb8] sm:$0xff]
    %v531 = vld [vmem:[%s4 + $0xc0] sm:$0xff]
    %v532 = vld [vmem:[%s4 + $0xc8] sm:$0xff]
    %v533 = vld [vmem:[%s4 + $0xd0] sm:$0xff]
    %v534 = vld [vmem:[%s4 + $0xd8] sm:$0xff]
    %v535 = vld [vmem:[%s4 + $0xe0] sm:$0xff]
    %v536 = vld [vmem:[%s4 + $0xe8] sm:$0xff]
    %v537 = vld [vmem:[%s4 + $0xf0] sm:$0xff]
    %v538 = vld [vmem:[%s4 + $0xf8] sm:$0xff]
    %v539 = vld [vmem:[%s4 + $0x100] sm:$0xff]
    %v540 = vld [vmem:[%s4 + $0x108] sm:$0xff]
    %v541 = vld [vmem:[%s4 + $0x110] sm:$0xff]
    %v542 = vld [vmem:[%s4 + $0x118] sm:$0xff]
    %v543 = vld [vmem:[%s4 + $0x120] sm:$0xff]
    %v544 = vld [vmem:[%s4 + $0x128] sm:$0xff]
    %v545 = vld [vmem:[%s4 + $0x130] sm:$0xff]
    %v546 = vld [vmem:[%s4 + $0x138] sm:$0xff]
    %v547 = vld [vmem:[%s4 + $0x140] sm:$0xff]
    %v548 = vld [vmem:[%s4 + $0x148] sm:$0xff]
    %v549 = vld [vmem:[%s4 + $0x150] sm:$0xff]
    %v550 = vld [vmem:[%s4 + $0x158] sm:$0xff]
    %v551 = vld [vmem:[%s4 + $0x160] sm:$0xff]
    %v552 = vld [vmem:[%s4 + $0x168] sm:$0xff]
    %v553 = vld [vmem:[%s4 + $0x170] sm:$0xff]
    %v554 = vld [vmem:[%s4 + $0x178] sm:$0xff]
    %v555 = vld [vmem:[%s4 + $0x180] sm:$0xff]
    %v556 = vld [vmem:[%s4 + $0x188] sm:$0xff]
    %v557 = vld [vmem:[%s4 + $0x190] sm:$0xff]
    %v558 = vld [vmem:[%s4 + $0x198] sm:$0xff]
    %v559 = vld [vmem:[%s4 + $0x1a0] sm:$0xff]
    %v560 = vld [vmem:[%s4 + $0x1a8] sm:$0xff]
    %v561 = vld [vmem:[%s4 + $0x1b0] sm:$0xff]
    %v562 = vld [vmem:[%s4 + $0x1b8] sm:$0xff]
    %v563 = vld [vmem:[%s4 + $0x1c0] sm:$0xff]
    %v564 = vld [vmem:[%s4 + $0x1c8] sm:$0xff]
    %v565 = vld [vmem:[%s4 + $0x1d0] sm:$0xff]
    %v566 = vld [vmem:[%s4 + $0x1d8] sm:$0xff]
    %v567 = vld [vmem:[%s4 + $0x1e0] sm:$0xff]
    %v568 = vld [vmem:[%s4 + $0x1e8] sm:$0xff]
    %v569 = vld [vmem:[%s4 + $0x1f0] sm:$0xff]
    %v570 = vld [vmem:[%s4 + $0x1f8] sm:$0xff]
    %v571 = vld [vmem:[%s5] sm:$0x1]
    %v573 = vlaneseq
    %v574 = vshrl.u32 %v573, 7
    %v575 = vsub.s32 0, %v574
    %v576 = vrot.slane %v571, %v575
    %578 = vmatprep.subr.mxu0 0.0
    %579 = vmatpush1.msra.mxu0 %v522
    %580 = vmatprep.subr.mxu0 0.0
    %581 = vmatpush1.msra.mxu0 %v521
    %582 = vmatprep.subr.mxu0 0.0
    %583 = vmatpush1.msra.mxu0 %v520
    %584 = vmatprep.subr.mxu0 0.0
    %585 = vmatpush1.msra.mxu0 %v519
    %586 = vmatprep.subr.mxu0 0.0
    %587 = vmatpush1.msra.mxu0 %v518
    %588 = vmatprep.subr.mxu0 0.0
    %589 = vmatpush1.msra.mxu0 %v517
    %590 = vmatprep.subr.mxu0 0.0
    %591 = vmatpush1.msra.mxu0 %v516
    %592 = vmatprep.subr.mxu0 0.0
    %593 = vmatpush1.msra.mxu0 %v515
    %594 = vmatprep.subr.mxu0 0.0
    %595 = vmatpush1.msra.mxu0 %v514
    %596 = vmatprep.subr.mxu0 0.0
    %597 = vmatpush1.msra.mxu0 %v513
    %598 = vmatprep.subr.mxu0 0.0
    %599 = vmatpush1.msra.mxu0 %v512
    %600 = vmatprep.subr.mxu0 0.0
    %601 = vmatpush1.msra.mxu0 %v511
    %602 = vmatprep.subr.mxu0 0.0
    %603 = vmatpush1.msra.mxu0 %v510
    %604 = vmatprep.subr.mxu0 0.0
    %605 = vmatpush1.msra.mxu0 %v509
    %606 = vmatprep.subr.mxu0 0.0
    %607 = vmatpush1.msra.mxu0 %v508
    %608 = vmatprep.subr.mxu0 0.0
    %609 = vmatpush1.msra.mxu0 %v507
    %610 = vmatprep.subr.mxu0 0.0
    %611 = vmatpush2.msra.mxu0 %v538
    %612 = vmatprep.subr.mxu0 0.0
    %613 = vmatpush2.msra.mxu0 %v537
    %614 = vmatprep.subr.mxu0 0.0
    %615 = vmatpush2.msra.mxu0 %v536
    %616 = vmatprep.subr.mxu0 0.0
    %617 = vmatpush2.msra.mxu0 %v535
    %618 = vmatprep.subr.mxu0 0.0
    %619 = vmatpush2.msra.mxu0 %v534
    %620 = vmatprep.subr.mxu0 0.0
    %621 = vmatpush2.msra.mxu0 %v533
    %622 = vmatprep.subr.mxu0 0.0
    %623 = vmatpush2.msra.mxu0 %v532
    %624 = vmatprep.subr.mxu0 0.0
    %625 = vmatpush2.msra.mxu0 %v531
    %626 = vmatprep.subr.mxu0 0.0
    %627 = vmatpush2.msra.mxu0 %v530
    %628 = vmatprep.subr.mxu0 0.0
    %629 = vmatpush2.msra.mxu0 %v529
    %630 = vmatprep.subr.mxu0 0.0
    %631 = vmatpush2.msra.mxu0 %v528
    %632 = vmatprep.subr.mxu0 0.0
    %633 = vmatpush2.msra.mxu0 %v527
    %634 = vmatprep.subr.mxu0 0.0
    %635 = vmatpush2.msra.mxu0 %v526
    %636 = vmatprep.subr.mxu0 0.0
    %637 = vmatpush2.msra.mxu0 %v525
    %638 = vmatprep.subr.mxu0 0.0
    %639 = vmatpush2.msra.mxu0 %v524
    %640 = vmatprep.subr.mxu0 0.0
    %641 = vmatpush2.msra.mxu0 %v523
    %642 = vmatprep.mubr.f32.mxu0 %v500
    %643 = vmatmul.mubr.f32.gmra.mxu0 %v499
    %v644 = vpop.f32.mrf.mxu0
    %v645 = vadd.f32 %v576, %v644
    %v646 = vpop.f32.mrf.mxu0
    %647 = vmatprep.mubr.f32.mxu0 %v504
    %648 = vmatmul.mubr.f32.gmra.mxu0 %v503
    %v649 = vpop.f32.mrf.mxu0
    %v650 = vadd.f32 %v576, %v649
    %v651 = vpop.f32.mrf.mxu0
    %652 = vdwg.mxu0
    %653 = vmatprep.subr.mxu0 0.0
    %654 = vmatpush1.msra.mxu0 %v554
    %655 = vmatprep.subr.mxu0 0.0
    %656 = vmatpush1.msra.mxu0 %v553
    %657 = vmatprep.subr.mxu0 0.0
    %658 = vmatpush1.msra.mxu0 %v552
    %659 = vmatprep.subr.mxu0 0.0
    %660 = vmatpush1.msra.mxu0 %v551
    %661 = vmatprep.subr.mxu0 0.0
    %662 = vmatpush1.msra.mxu0 %v550
    %663 = vmatprep.subr.mxu0 0.0
    %664 = vmatpush1.msra.mxu0 %v549
    %665 = vmatprep.subr.mxu0 0.0
    %666 = vmatpush1.msra.mxu0 %v548
    %667 = vmatprep.subr.mxu0 0.0
    %668 = vmatpush1.msra.mxu0 %v547
    %669 = vmatprep.subr.mxu0 0.0
    %670 = vmatpush1.msra.mxu0 %v546
    %671 = vmatprep.subr.mxu0 0.0
    %672 = vmatpush1.msra.mxu0 %v545
    %673 = vmatprep.subr.mxu0 0.0
    %674 = vmatpush1.msra.mxu0 %v544
    %675 = vmatprep.subr.mxu0 0.0
    %676 = vmatpush1.msra.mxu0 %v543
    %677 = vmatprep.subr.mxu0 0.0
    %678 = vmatpush1.msra.mxu0 %v542
    %679 = vmatprep.subr.mxu0 0.0
    %680 = vmatpush1.msra.mxu0 %v541
    %681 = vmatprep.subr.mxu0 0.0
    %682 = vmatpush1.msra.mxu0 %v540
    %683 = vmatprep.subr.mxu0 0.0
    %684 = vmatpush1.msra.mxu0 %v539
    %685 = vmatprep.subr.mxu0 0.0
    %686 = vmatpush2.msra.mxu0 %v570
    %687 = vmatprep.subr.mxu0 0.0
    %688 = vmatpush2.msra.mxu0 %v569
    %689 = vmatprep.subr.mxu0 0.0
    %690 = vmatpush2.msra.mxu0 %v568
    %691 = vmatprep.subr.mxu0 0.0
    %692 = vmatpush2.msra.mxu0 %v567
    %693 = vmatprep.subr.mxu0 0.0
    %694 = vmatpush2.msra.mxu0 %v566
    %695 = vmatprep.subr.mxu0 0.0
    %696 = vmatpush2.msra.mxu0 %v565
    %697 = vmatprep.subr.mxu0 0.0
    %698 = vmatpush2.msra.mxu0 %v564
    %699 = vmatprep.subr.mxu0 0.0
    %700 = vmatpush2.msra.mxu0 %v563
    %701 = vmatprep.subr.mxu0 0.0
    %702 = vmatpush2.msra.mxu0 %v562
    %703 = vmatprep.subr.mxu0 0.0
    %704 = vmatpush2.msra.mxu0 %v561
    %705 = vmatprep.subr.mxu0 0.0
    %706 = vmatpush2.msra.mxu0 %v560
    %707 = vmatprep.subr.mxu0 0.0
    %708 = vmatpush2.msra.mxu0 %v559
    %709 = vmatprep.subr.mxu0 0.0
    %710 = vmatpush2.msra.mxu0 %v558
    %711 = vmatprep.subr.mxu0 0.0
    %712 = vmatpush2.msra.mxu0 %v557
    %713 = vmatprep.subr.mxu0 0.0
    %714 = vmatpush2.msra.mxu0 %v556
    %715 = vmatprep.subr.mxu0 0.0
    %716 = vmatpush2.msra.mxu0 %v555
    %717 = vmatprep.mubr.f32.mxu0 %v502
    %718 = vmatmul.mubr.f32.gmra.mxu0 %v501
    %v719 = vpop.f32.mrf.mxu0
    %v720 = vadd.f32 %v645, %v719
    %v721 = vpop.f32.mrf.mxu0
    %722 = vmatprep.mubr.f32.mxu0 %v506
    %723 = vmatmul.mubr.f32.gmra.mxu0 %v505
    %v724 = vpop.f32.mrf.mxu0
    %v725 = vadd.f32 %v650, %v724
    %v726 = vpop.f32.mrf.mxu0
    %727 = vdwg.mxu0
    %v728 = vmax.f32 %v720, 0.0
    %v729 = vmax.f32 %v725, 0.0
    %v730 = vld [vmem:[%s6] sm:$0xff]
    %v731 = vld [vmem:[%s6 + $0x8] sm:$0xff]
    %v732 = vld [vmem:[%s6 + $0x10] sm:$0xff]
    %v733 = vld [vmem:[%s6 + $0x18] sm:$0xff]
    %v734 = vld [vmem:[%s7] sm:$0x1]
    %v736 = vlaneseq
    %v737 = vshrl.u32 %v736, 7
    %v738 = vsub.s32 0, %v737
    %v739 = vrot.slane %v734, %v738
    %vm741 = vcmask 261120
    %v743 = vsel %vm741, %v728, 0
    %v746 = vsel %vm741, %v729, 0
    %748 = vmatprep.subr.mxu0 0.0
    %749 = vmatpush1.msra.mxu0 0.0
    %750 = vmatprep.subr.mxu0 0.0
    %751 = vmatpush1.msra.mxu0 0.0
    %752 = vmatprep.subr.mxu0 0.0
    %753 = vmatpush1.msra.mxu0 0.0
    %754 = vmatprep.subr.mxu0 0.0
    %755 = vmatpush1.msra.mxu0 0.0
    %756 = vmatprep.subr.mxu0 0.0
    %757 = vmatpush1.msra.mxu0 0.0
    %758 = vmatprep.subr.mxu0 0.0
    %759 = vmatpush1.msra.mxu0 0.0
    %760 = vmatprep.subr.mxu0 0.0
    %761 = vmatpush1.msra.mxu0 0.0
    %762 = vmatprep.subr.mxu0 0.0
    %763 = vmatpush1.msra.mxu0 0.0
    %764 = vmatprep.subr.mxu0 0.0
    %765 = vmatpush1.msra.mxu0 0.0
    %766 = vmatprep.subr.mxu0 0.0
    %767 = vmatpush1.msra.mxu0 0.0
    %768 = vmatprep.subr.mxu0 0.0
    %769 = vmatpush1.msra.mxu0 0.0
    %770 = vmatprep.subr.mxu0 0.0
    %771 = vmatpush1.msra.mxu0 0.0
    %772 = vmatprep.subr.mxu0 0.0
    %773 = vmatpush1.msra.mxu0 %v733
    %774 = vmatprep.subr.mxu0 0.0
    %775 = vmatpush1.msra.mxu0 %v732
    %776 = vmatprep.subr.mxu0 0.0
    %777 = vmatpush1.msra.mxu0 %v731
    %778 = vmatprep.subr.mxu0 0.0
    %779 = vmatpush1.msra.mxu0 %v730
    %780 = vmatprep.subr.mxu0 0.0
    %781 = vmatpush2.msra.mxu0 0.0
    %782 = vmatprep.subr.mxu0 0.0
    %783 = vmatpush2.msra.mxu0 0.0
    %784 = vmatprep.subr.mxu0 0.0
    %785 = vmatpush2.msra.mxu0 0.0
    %786 = vmatprep.subr.mxu0 0.0
    %787 = vmatpush2.msra.mxu0 0.0
    %788 = vmatprep.subr.mxu0 0.0
    %789 = vmatpush2.msra.mxu0 0.0
    %790 = vmatprep.subr.mxu0 0.0
    %791 = vmatpush2.msra.mxu0 0.0
    %792 = vmatprep.subr.mxu0 0.0
    %793 = vmatpush2.msra.mxu0 0.0
    %794 = vmatprep.subr.mxu0 0.0
    %795 = vmatpush2.msra.mxu0 0.0
    %796 = vmatprep.subr.mxu0 0.0
    %797 = vmatpush2.msra.mxu0 0.0
    %798 = vmatprep.subr.mxu0 0.0
    %799 = vmatpush2.msra.mxu0 0.0
    %800 = vmatprep.subr.mxu0 0.0
    %801 = vmatpush2.msra.mxu0 0.0
    %802 = vmatprep.subr.mxu0 0.0
    %803 = vmatpush2.msra.mxu0 0.0
    %804 = vmatprep.subr.mxu0 0.0
    %805 = vmatpush2.msra.mxu0 0.0
    %806 = vmatprep.subr.mxu0 0.0
    %807 = vmatpush2.msra.mxu0 0.0
    %808 = vmatprep.subr.mxu0 0.0
    %809 = vmatpush2.msra.mxu0 0.0
    %810 = vmatprep.subr.mxu0 0.0
    %811 = vmatpush2.msra.mxu0 0.0
    %812 = vmatprep.mubr.f32.mxu0 0.0
    %813 = vmatmul.mubr.f32.gmra.mxu0 %v743
    %v814 = vpop.f32.mrf.mxu0
    %v815 = vadd.f32 %v739, %v814
    %v816 = vpop.f32.mrf.mxu0
    %817 = vmatprep.mubr.f32.mxu0 0.0
    %818 = vmatmul.mubr.f32.gmra.mxu0 %v746
    %v819 = vpop.f32.mrf.mxu0
    %v820 = vadd.f32 %v739, %v819
    %v821 = vpop.f32.mrf.mxu0
    %822 = vdwg.mxu0
    %v823 = vld [vmem:[%s1] sm:$0x3]
    %v824 = vld [vmem:[%s8] sm:$0xff]
    %v825 = vld [vmem:[%s8 + $0x8] sm:$0xff]
    %v826 = vld [vmem:[%s8 + $0x10] sm:$0xff]
    %v827 = vld [vmem:[%s8 + $0x18] sm:$0xff]
    %v829 = vsel %vm741, 0.0, 0
    %831 = vmatprep.subr.mxu0 0.0
    %832 = vmatpush1.msra.mxu0 0.0
    %833 = vmatprep.subr.mxu0 0.0
    %834 = vmatpush1.msra.mxu0 0.0
    %835 = vmatprep.subr.mxu0 0.0
    %836 = vmatpush1.msra.mxu0 0.0
    %837 = vmatprep.subr.mxu0 0.0
    %838 = vmatpush1.msra.mxu0 0.0
    %839 = vmatprep.subr.mxu0 0.0
    %840 = vmatpush1.msra.mxu0 0.0
    %841 = vmatprep.subr.mxu0 0.0
    %842 = vmatpush1.msra.mxu0 0.0
    %843 = vmatprep.subr.mxu0 0.0
    %844 = vmatpush1.msra.mxu0 0.0
    %845 = vmatprep.subr.mxu0 0.0
    %846 = vmatpush1.msra.mxu0 0.0
    %847 = vmatprep.subr.mxu0 0.0
    %848 = vmatpush1.msra.mxu0 0.0
    %849 = vmatprep.subr.mxu0 0.0
    %850 = vmatpush1.msra.mxu0 0.0
    %851 = vmatprep.subr.mxu0 0.0
    %852 = vmatpush1.msra.mxu0 0.0
    %853 = vmatprep.subr.mxu0 0.0
    %854 = vmatpush1.msra.mxu0 0.0
    %855 = vmatprep.subr.mxu0 0.0
    %856 = vmatpush1.msra.mxu0 %v827
    %857 = vmatprep.subr.mxu0 0.0
    %858 = vmatpush1.msra.mxu0 %v826
    %859 = vmatprep.subr.mxu0 0.0
    %860 = vmatpush1.msra.mxu0 %v825
    %861 = vmatprep.subr.mxu0 0.0
    %862 = vmatpush1.msra.mxu0 %v824
    %863 = vmatprep.subr.mxu0 0.0
    %864 = vmatpush2.msra.mxu0 0.0
    %865 = vmatprep.subr.mxu0 0.0
    %866 = vmatpush2.msra.mxu0 0.0
    %867 = vmatprep.subr.mxu0 0.0
    %868 = vmatpush2.msra.mxu0 0.0
    %869 = vmatprep.subr.mxu0 0.0
    %870 = vmatpush2.msra.mxu0 0.0
    %871 = vmatprep.subr.mxu0 0.0
    %872 = vmatpush2.msra.mxu0 0.0
    %873 = vmatprep.subr.mxu0 0.0
    %874 = vmatpush2.msra.mxu0 0.0
    %875 = vmatprep.subr.mxu0 0.0
    %876 = vmatpush2.msra.mxu0 0.0
    %877 = vmatprep.subr.mxu0 0.0
    %878 = vmatpush2.msra.mxu0 0.0
    %879 = vmatprep.subr.mxu0 0.0
    %880 = vmatpush2.msra.mxu0 0.0
    %881 = vmatprep.subr.mxu0 0.0
    %882 = vmatpush2.msra.mxu0 0.0
    %883 = vmatprep.subr.mxu0 0.0
    %884 = vmatpush2.msra.mxu0 0.0
    %885 = vmatprep.subr.mxu0 0.0
    %886 = vmatpush2.msra.mxu0 0.0
    %887 = vmatprep.subr.mxu0 0.0
    %888 = vmatpush2.msra.mxu0 0.0
    %889 = vmatprep.subr.mxu0 0.0
    %890 = vmatpush2.msra.mxu0 0.0
    %891 = vmatprep.subr.mxu0 0.0
    %892 = vmatpush2.msra.mxu0 0.0
    %893 = vmatprep.subr.mxu0 0.0
    %894 = vmatpush2.msra.mxu0 0.0
    %895 = vmatprep.mubr.f32.mxu0 0.0
    %896 = vmatmul.mubr.f32.gmra.mxu0 %v829
    %v897 = vpop.f32.mrf.mxu0
    %v898 = vadd.f32 0.0, %v897
    %v899 = vpop.f32.mrf.mxu0
    %900 = vdwg.mxu0
    %v902 = vrot.slane %v898, 1
    %v905 = vadd.f32 %v815, %v898
    %v906 = vadd.f32 %v820, %v902
    %v907 = vxor.u32 %v905, 2147483648
    %v908 = vxor.u32 %v906, 2147483648
    %v909 = vmul.f32 %v907, 1.442695
    %v910 = vpow.pop %v909
    %v911 = vmul.f32 %v908, 1.442695
    %v912 = vpow.pop %v911
    %v913 = vadd.f32 %v910, 1.0
    %v914 = vadd.f32 %v912, 1.0
    %v915 = vrcp.pop %v913
    %v916 = vmul.f32 1.0, %v915
    %v917 = vrcp.pop %v914
    %v918 = vmul.f32 1.0, %v917
    %v919 = vtanh.pop %v905
    %v920 = vtanh.pop %v906
    %v921 = vmul.f32 %v916, 0.0
    %v922 = vmul.f32 %v918, 0.0
    %925 = vrot.lane.b32.xlu0 %v919, 64
    %v926 = vpop.permute.xlu0 %925
    %927 = vrot.lane.b32.xlu0 %v920, 64
    %v928 = vpop.permute.xlu0 %927
    %v931 = vmul.f32 %v916, %v926
    %v932 = vmul.f32 %v918, %v928
    %935 = vrot.lane.b32.xlu0 %v931, 32
    %v936 = vpop.permute.xlu0 %935
    %937 = vrot.lane.b32.xlu0 %v932, 32
    %v938 = vpop.permute.xlu0 %937
    %v941 = vadd.f32 %v921, %v936
    %v942 = vadd.f32 %v922, %v938
    %v943 = vtanh.pop %v941
    %v944 = vtanh.pop %v942
    %947 = vrot.lane.b32.xlu0 %v943, 64
    %v948 = vpop.permute.xlu0 %947
    %949 = vrot.lane.b32.xlu0 %v944, 64
    %v950 = vpop.permute.xlu0 %949
    %v953 = vmul.f32 %v916, %v948
    %v954 = vmul.f32 %v918, %v950
    %956 = vset.pattern.permute.xlu0 0
    %957 = vperm.xlu0 %956, %v823
    %v958 = vpop.permute.xlu0 %957
    %v962 = vrot.slane %v954, 7
    %v963 = vsel %vm307, %v962, %v953
    %964 = vrot.lane.b32.xlu0 %v963, 32
    %v965 = vpop.permute.xlu0 %964
    %v967 = vmul.f32 %v958, %v965
    %v968 = vsub.f32 1.0, %v823
    %970 = vset.pattern.permute.xlu0 0
    %971 = vperm.xlu0 %970, %v968
    %v972 = vpop.permute.xlu0 %971
    %v974 = vmul.f32 %v972, 0.0
    %v975 = vadd.f32 %v967, %v974
    %v978 = vrot.slane %v942, 7
    %v979 = vsel %vm307, %v978, %v941
    %980 = vrot.lane.b32.xlu0 %v979, 96
    %v981 = vpop.permute.xlu0 %980
    %v983 = vmul.f32 %v958, %v981
    %v984 = vadd.f32 %v983, %v974
    %v985 = vadd.f32 %v967, 0.0
    %v987 = vsel %vm741, %v975, 0
    %989 = vmatprep.subr.mxu0 0.0
    %990 = vmatpush1.msra.mxu0 0.0
    %991 = vmatprep.subr.mxu0 0.0
    %992 = vmatpush1.msra.mxu0 0.0
    %993 = vmatprep.subr.mxu0 0.0
    %994 = vmatpush1.msra.mxu0 0.0
    %995 = vmatprep.subr.mxu0 0.0
    %996 = vmatpush1.msra.mxu0 0.0
    %997 = vmatprep.subr.mxu0 0.0
    %998 = vmatpush1.msra.mxu0 0.0
    %999 = vmatprep.subr.mxu0 0.0
    %1000 = vmatpush1.msra.mxu0 0.0
    %1001 = vmatprep.subr.mxu0 0.0
    %1002 = vmatpush1.msra.mxu0 0.0
    %1003 = vmatprep.subr.mxu0 0.0
    %1004 = vmatpush1.msra.mxu0 0.0
    %1005 = vmatprep.subr.mxu0 0.0
    %1006 = vmatpush1.msra.mxu0 0.0
    %1007 = vmatprep.subr.mxu0 0.0
    %1008 = vmatpush1.msra.mxu0 0.0
    %1009 = vmatprep.subr.mxu0 0.0
    %1010 = vmatpush1.msra.mxu0 0.0
    %1011 = vmatprep.subr.mxu0 0.0
    %1012 = vmatpush1.msra.mxu0 0.0
    %1013 = vmatprep.subr.mxu0 0.0
    %1014 = vmatpush1.msra.mxu0 %v827
    %1015 = vmatprep.subr.mxu0 0.0
    %1016 = vmatpush1.msra.mxu0 %v826
    %1017 = vmatprep.subr.mxu0 0.0
    %1018 = vmatpush1.msra.mxu0 %v825
    %1019 = vmatprep.subr.mxu0 0.0
    %1020 = vmatpush1.msra.mxu0 %v824
    %1021 = vmatprep.subr.mxu0 0.0
    %1022 = vmatpush2.msra.mxu0 0.0
    %1023 = vmatprep.subr.mxu0 0.0
    %1024 = vmatpush2.msra.mxu0 0.0
    %1025 = vmatprep.subr.mxu0 0.0
    %1026 = vmatpush2.msra.mxu0 0.0
    %1027 = vmatprep.subr.mxu0 0.0
    %1028 = vmatpush2.msra.mxu0 0.0
    %1029 = vmatprep.subr.mxu0 0.0
    %1030 = vmatpush2.msra.mxu0 0.0
    %1031 = vmatprep.subr.mxu0 0.0
    %1032 = vmatpush2.msra.mxu0 0.0
    %1033 = vmatprep.subr.mxu0 0.0
    %1034 = vmatpush2.msra.mxu0 0.0
    %1035 = vmatprep.subr.mxu0 0.0
    %1036 = vmatpush2.msra.mxu0 0.0
    %1037 = vmatprep.subr.mxu0 0.0
    %1038 = vmatpush2.msra.mxu0 0.0
    %1039 = vmatprep.subr.mxu0 0.0
    %1040 = vmatpush2.msra.mxu0 0.0
    %1041 = vmatprep.subr.mxu0 0.0
    %1042 = vmatpush2.msra.mxu0 0.0
    %1043 = vmatprep.subr.mxu0 0.0
    %1044 = vmatpush2.msra.mxu0 0.0
    %1045 = vmatprep.subr.mxu0 0.0
    %1046 = vmatpush2.msra.mxu0 0.0
    %1047 = vmatprep.subr.mxu0 0.0
    %1048 = vmatpush2.msra.mxu0 0.0
    %1049 = vmatprep.subr.mxu0 0.0
    %1050 = vmatpush2.msra.mxu0 0.0
    %1051 = vmatprep.subr.mxu0 0.0
    %1052 = vmatpush2.msra.mxu0 0.0
    %1053 = vmatprep.mubr.f32.mxu0 0.0
    %1054 = vmatmul.mubr.f32.gmra.mxu0 %v987
    %v1055 = vpop.f32.mrf.mxu0
    %v1056 = vadd.f32 0.0, %v1055
    %v1057 = vpop.f32.mrf.mxu0
    %1058 = vdwg.mxu0
    %v1060 = vrot.slane %v1056, 7
    %v1063 = vadd.f32 %v815, %v1060
    %v1064 = vadd.f32 %v820, %v1056
    %v1065 = vxor.u32 %v1063, 2147483648
    %v1066 = vxor.u32 %v1064, 2147483648
    %v1067 = vmul.f32 %v1065, 1.442695
    %v1068 = vpow.pop %v1067
    %v1069 = vmul.f32 %v1066, 1.442695
    %v1070 = vpow.pop %v1069
    %v1071 = vadd.f32 %v1068, 1.0
    %v1072 = vadd.f32 %v1070, 1.0
    %v1073 = vrcp.pop %v1071
    %v1074 = vmul.f32 1.0, %v1073
    %v1075 = vrcp.pop %v1072
    %v1076 = vmul.f32 1.0, %v1075
    %v1077 = vtanh.pop %v1063
    %v1078 = vtanh.pop %v1064
    %v1080 = vrot.slane %v984, 7
    %1081 = vrot.lane.b32.xlu0 %v1080, 32
    %v1082 = vpop.permute.xlu0 %1081
    %1083 = vrot.lane.b32.xlu0 %v984, 32
    %v1084 = vpop.permute.xlu0 %1083
    %v1087 = vmul.f32 %v1074, %v1082
    %v1088 = vmul.f32 %v1076, %v1084
    %1091 = vrot.lane.b32.xlu0 %v1077, 64
    %v1092 = vpop.permute.xlu0 %1091
    %1093 = vrot.lane.b32.xlu0 %v1078, 64
    %v1094 = vpop.permute.xlu0 %1093
    %v1097 = vmul.f32 %v1074, %v1092
    %v1098 = vmul.f32 %v1076, %v1094
    %1101 = vrot.lane.b32.xlu0 %v1097, 32
    %v1102 = vpop.permute.xlu0 %1101
    %1103 = vrot.lane.b32.xlu0 %v1098, 32
    %v1104 = vpop.permute.xlu0 %1103
    %v1107 = vadd.f32 %v1087, %v1102
    %v1108 = vadd.f32 %v1088, %v1104
    %v1109 = vtanh.pop %v1107
    %v1110 = vtanh.pop %v1108
    %1113 = vrot.lane.b32.xlu0 %v1109, 64
    %v1114 = vpop.permute.xlu0 %1113
    %1115 = vrot.lane.b32.xlu0 %v1110, 64
    %v1116 = vpop.permute.xlu0 %1115
    %v1119 = vmul.f32 %v1074, %v1114
    %v1120 = vmul.f32 %v1076, %v1116
    %1121 = vset.pattern.permute.xlu0 1
    %1122 = vperm.xlu0 %1121, %v823
    %v1123 = vpop.permute.xlu0 %1122
    %v1127 = vrot.slane %v1119, 1
    %v1128 = vsel %vm307, %v1120, %v1127
    %1129 = vrot.lane.b32.xlu0 %v1128, 32
    %v1130 = vpop.permute.xlu0 %1129
    %v1132 = vmul.f32 %v1123, %v1130
    %1133 = vset.pattern.permute.xlu0 1
    %1134 = vperm.xlu0 %1133, %v968
    %v1135 = vpop.permute.xlu0 %1134
    %v1137 = vmul.f32 %v1135, %v975
    %v1138 = vadd.f32 %v1132, %v1137
    %v1141 = vrot.slane %v1107, 1
    %v1142 = vsel %vm307, %v1108, %v1141
    %1143 = vrot.lane.b32.xlu0 %v1142, 96
    %v1144 = vpop.permute.xlu0 %1143
    %v1146 = vmul.f32 %v1123, %v1144
    %v1147 = vmul.f32 %v1135, %v984
    %v1148 = vadd.f32 %v1146, %v1147
    %v1149 = vadd.f32 %v985, %v1132
    %v1151 = vsel %vm741, %v1138, 0
    %1153 = vmatprep.subr.mxu0 0.0
    %1154 = vmatpush1.msra.mxu0 0.0
    %1155 = vmatprep.subr.mxu0 0.0
    %1156 = vmatpush1.msra.mxu0 0.0
    %1157 = vmatprep.subr.mxu0 0.0
    %1158 = vmatpush1.msra.mxu0 0.0
    %1159 = vmatprep.subr.mxu0 0.0
    %1160 = vmatpush1.msra.mxu0 0.0
    %1161 = vmatprep.subr.mxu0 0.0
    %1162 = vmatpush1.msra.mxu0 0.0
    %1163 = vmatprep.subr.mxu0 0.0
    %1164 = vmatpush1.msra.mxu0 0.0
    %1165 = vmatprep.subr.mxu0 0.0
    %1166 = vmatpush1.msra.mxu0 0.0
    %1167 = vmatprep.subr.mxu0 0.0
    %1168 = vmatpush1.msra.mxu0 0.0
    %1169 = vmatprep.subr.mxu0 0.0
    %1170 = vmatpush1.msra.mxu0 0.0
    %1171 = vmatprep.subr.mxu0 0.0
    %1172 = vmatpush1.msra.mxu0 0.0
    %1173 = vmatprep.subr.mxu0 0.0
    %1174 = vmatpush1.msra.mxu0 0.0
    %1175 = vmatprep.subr.mxu0 0.0
    %1176 = vmatpush1.msra.mxu0 0.0
    %1177 = vmatprep.subr.mxu0 0.0
    %1178 = vmatpush1.msra.mxu0 %v827
    %1179 = vmatprep.subr.mxu0 0.0
    %1180 = vmatpush1.msra.mxu0 %v826
    %1181 = vmatprep.subr.mxu0 0.0
    %1182 = vmatpush1.msra.mxu0 %v825
    %1183 = vmatprep.subr.mxu0 0.0
    %1184 = vmatpush1.msra.mxu0 %v824
    %1185 = vmatprep.subr.mxu0 0.0
    %1186 = vmatpush2.msra.mxu0 0.0
    %1187 = vmatprep.subr.mxu0 0.0
    %1188 = vmatpush2.msra.mxu0 0.0
    %1189 = vmatprep.subr.mxu0 0.0
    %1190 = vmatpush2.msra.mxu0 0.0
    %1191 = vmatprep.subr.mxu0 0.0
    %1192 = vmatpush2.msra.mxu0 0.0
    %1193 = vmatprep.subr.mxu0 0.0
    %1194 = vmatpush2.msra.mxu0 0.0
    %1195 = vmatprep.subr.mxu0 0.0
    %1196 = vmatpush2.msra.mxu0 0.0
    %1197 = vmatprep.subr.mxu0 0.0
    %1198 = vmatpush2.msra.mxu0 0.0
    %1199 = vmatprep.subr.mxu0 0.0
    %1200 = vmatpush2.msra.mxu0 0.0
    %1201 = vmatprep.subr.mxu0 0.0
    %1202 = vmatpush2.msra.mxu0 0.0
    %1203 = vmatprep.subr.mxu0 0.0
    %1204 = vmatpush2.msra.mxu0 0.0
    %1205 = vmatprep.subr.mxu0 0.0
    %1206 = vmatpush2.msra.mxu0 0.0
    %1207 = vmatprep.subr.mxu0 0.0
    %1208 = vmatpush2.msra.mxu0 0.0
    %1209 = vmatprep.subr.mxu0 0.0
    %1210 = vmatpush2.msra.mxu0 0.0
    %1211 = vmatprep.subr.mxu0 0.0
    %1212 = vmatpush2.msra.mxu0 0.0
    %1213 = vmatprep.subr.mxu0 0.0
    %1214 = vmatpush2.msra.mxu0 0.0
    %1215 = vmatprep.subr.mxu0 0.0
    %1216 = vmatpush2.msra.mxu0 0.0
    %1217 = vmatprep.mubr.f32.mxu0 0.0
    %1218 = vmatmul.mubr.f32.gmra.mxu0 %v1151
    %v1219 = vpop.f32.mrf.mxu0
    %v1220 = vadd.f32 0.0, %v1219
    %v1221 = vpop.f32.mrf.mxu0
    %1222 = vdwg.mxu0
    %v1224 = vrot.slane %v1220, 6
    %v1225 = vrot.slane %v1220, 7
    %v1228 = vadd.f32 %v815, %v1224
    %v1229 = vadd.f32 %v820, %v1225
    %v1230 = vxor.u32 %v1228, 2147483648
    %v1231 = vxor.u32 %v1229, 2147483648
    %v1232 = vmul.f32 %v1230, 1.442695
    %v1233 = vpow.pop %v1232
    %v1234 = vmul.f32 %v1231, 1.442695
    %v1235 = vpow.pop %v1234
    %v1236 = vadd.f32 %v1233, 1.0
    %v1237 = vadd.f32 %v1235, 1.0
    %v1238 = vrcp.pop %v1236
    %v1239 = vmul.f32 1.0, %v1238
    %v1240 = vrcp.pop %v1237
    %v1241 = vmul.f32 1.0, %v1240
    %v1242 = vtanh.pop %v1228
    %v1243 = vtanh.pop %v1229
    %v1245 = vrot.slane %v1148, 6
    %v1246 = vrot.slane %v1148, 7
    %1247 = vrot.lane.b32.xlu0 %v1245, 32
    %v1248 = vpop.permute.xlu0 %1247
    %1249 = vrot.lane.b32.xlu0 %v1246, 32
    %v1250 = vpop.permute.xlu0 %1249
    %v1253 = vmul.f32 %v1239, %v1248
    %v1254 = vmul.f32 %v1241, %v1250
    %1257 = vrot.lane.b32.xlu0 %v1242, 64
    %v1258 = vpop.permute.xlu0 %1257
    %1259 = vrot.lane.b32.xlu0 %v1243, 64
    %v1260 = vpop.permute.xlu0 %1259
    %v1263 = vmul.f32 %v1239, %v1258
    %v1264 = vmul.f32 %v1241, %v1260
    %1267 = vrot.lane.b32.xlu0 %v1263, 32
    %v1268 = vpop.permute.xlu0 %1267
    %1269 = vrot.lane.b32.xlu0 %v1264, 32
    %v1270 = vpop.permute.xlu0 %1269
    %v1273 = vadd.f32 %v1253, %v1268
    %v1274 = vadd.f32 %v1254, %v1270
    %v1275 = vtanh.pop %v1273
    %v1276 = vtanh.pop %v1274
    %1279 = vrot.lane.b32.xlu0 %v1275, 64
    %v1280 = vpop.permute.xlu0 %1279
    %1281 = vrot.lane.b32.xlu0 %v1276, 64
    %v1282 = vpop.permute.xlu0 %1281
    %v1285 = vmul.f32 %v1239, %v1280
    %v1286 = vmul.f32 %v1241, %v1282
    %1287 = vset.pattern.permute.xlu0 2
    %1288 = vperm.xlu0 %1287, %v823
    %v1289 = vpop.permute.xlu0 %1288
    %v1293 = vrot.slane %v1285, 2
    %v1294 = vrot.slane %v1286, 1
    %v1295 = vsel %vm307, %v1294, %v1293
    %1296 = vrot.lane.b32.xlu0 %v1295, 32
    %v1297 = vpop.permute.xlu0 %1296
    %v1299 = vmul.f32 %v1289, %v1297
    %1300 = vset.pattern.permute.xlu0 2
    %1301 = vperm.xlu0 %1300, %v968
    %v1302 = vpop.permute.xlu0 %1301
    %v1304 = vmul.f32 %v1302, %v1138
    %v1305 = vadd.f32 %v1299, %v1304
    %v1308 = vrot.slane %v1273, 2
    %v1309 = vrot.slane %v1274, 1
    %v1310 = vsel %vm307, %v1309, %v1308
    %1311 = vrot.lane.b32.xlu0 %v1310, 96
    %v1312 = vpop.permute.xlu0 %1311
    %v1314 = vmul.f32 %v1289, %v1312
    %v1315 = vmul.f32 %v1302, %v1148
    %v1316 = vadd.f32 %v1314, %v1315
    %v1317 = vadd.f32 %v1149, %v1299
    %v1319 = vsel %vm741, %v1305, 0
    %1321 = vmatprep.subr.mxu0 0.0
    %1322 = vmatpush1.msra.mxu0 0.0
    %1323 = vmatprep.subr.mxu0 0.0
    %1324 = vmatpush1.msra.mxu0 0.0
    %1325 = vmatprep.subr.mxu0 0.0
    %1326 = vmatpush1.msra.mxu0 0.0
    %1327 = vmatprep.subr.mxu0 0.0
    %1328 = vmatpush1.msra.mxu0 0.0
    %1329 = vmatprep.subr.mxu0 0.0
    %1330 = vmatpush1.msra.mxu0 0.0
    %1331 = vmatprep.subr.mxu0 0.0
    %1332 = vmatpush1.msra.mxu0 0.0
    %1333 = vmatprep.subr.mxu0 0.0
    %1334 = vmatpush1.msra.mxu0 0.0
    %1335 = vmatprep.subr.mxu0 0.0
    %1336 = vmatpush1.msra.mxu0 0.0
    %1337 = vmatprep.subr.mxu0 0.0
    %1338 = vmatpush1.msra.mxu0 0.0
    %1339 = vmatprep.subr.mxu0 0.0
    %1340 = vmatpush1.msra.mxu0 0.0
    %1341 = vmatprep.subr.mxu0 0.0
    %1342 = vmatpush1.msra.mxu0 0.0
    %1343 = vmatprep.subr.mxu0 0.0
    %1344 = vmatpush1.msra.mxu0 0.0
    %1345 = vmatprep.subr.mxu0 0.0
    %1346 = vmatpush1.msra.mxu0 %v827
    %1347 = vmatprep.subr.mxu0 0.0
    %1348 = vmatpush1.msra.mxu0 %v826
    %1349 = vmatprep.subr.mxu0 0.0
    %1350 = vmatpush1.msra.mxu0 %v825
    %1351 = vmatprep.subr.mxu0 0.0
    %1352 = vmatpush1.msra.mxu0 %v824
    %1353 = vmatprep.subr.mxu0 0.0
    %1354 = vmatpush2.msra.mxu0 0.0
    %1355 = vmatprep.subr.mxu0 0.0
    %1356 = vmatpush2.msra.mxu0 0.0
    %1357 = vmatprep.subr.mxu0 0.0
    %1358 = vmatpush2.msra.mxu0 0.0
    %1359 = vmatprep.subr.mxu0 0.0
    %1360 = vmatpush2.msra.mxu0 0.0
    %1361 = vmatprep.subr.mxu0 0.0
    %1362 = vmatpush2.msra.mxu0 0.0
    %1363 = vmatprep.subr.mxu0 0.0
    %1364 = vmatpush2.msra.mxu0 0.0
    %1365 = vmatprep.subr.mxu0 0.0
    %1366 = vmatpush2.msra.mxu0 0.0
    %1367 = vmatprep.subr.mxu0 0.0
    %1368 = vmatpush2.msra.mxu0 0.0
    %1369 = vmatprep.subr.mxu0 0.0
    %1370 = vmatpush2.msra.mxu0 0.0
    %1371 = vmatprep.subr.mxu0 0.0
    %1372 = vmatpush2.msra.mxu0 0.0
    %1373 = vmatprep.subr.mxu0 0.0
    %1374 = vmatpush2.msra.mxu0 0.0
    %1375 = vmatprep.subr.mxu0 0.0
    %1376 = vmatpush2.msra.mxu0 0.0
    %1377 = vmatprep.subr.mxu0 0.0
    %1378 = vmatpush2.msra.mxu0 0.0
    %1379 = vmatprep.subr.mxu0 0.0
    %1380 = vmatpush2.msra.mxu0 0.0
    %1381 = vmatprep.subr.mxu0 0.0
    %1382 = vmatpush2.msra.mxu0 0.0
    %1383 = vmatprep.subr.mxu0 0.0
    %1384 = vmatpush2.msra.mxu0 0.0
    %1385 = vmatprep.mubr.f32.mxu0 0.0
    %1386 = vmatmul.mubr.f32.gmra.mxu0 %v1319
    %v1387 = vpop.f32.mrf.mxu0
    %v1388 = vadd.f32 0.0, %v1387
    %v1389 = vpop.f32.mrf.mxu0
    %1390 = vdwg.mxu0
    %v1392 = vrot.slane %v1388, 5
    %v1393 = vrot.slane %v1388, 6
    %v1396 = vadd.f32 %v815, %v1392
    %v1397 = vadd.f32 %v820, %v1393
    %v1398 = vxor.u32 %v1396, 2147483648
    %v1399 = vxor.u32 %v1397, 2147483648
    %v1400 = vmul.f32 %v1398, 1.442695
    %v1401 = vpow.pop %v1400
    %v1402 = vmul.f32 %v1399, 1.442695
    %v1403 = vpow.pop %v1402
    %v1404 = vadd.f32 %v1401, 1.0
    %v1405 = vadd.f32 %v1403, 1.0
    %v1406 = vrcp.pop %v1404
    %v1407 = vmul.f32 1.0, %v1406
    %v1408 = vrcp.pop %v1405
    %v1409 = vmul.f32 1.0, %v1408
    %v1410 = vtanh.pop %v1396
    %v1411 = vtanh.pop %v1397
    %v1413 = vrot.slane %v1316, 5
    %v1414 = vrot.slane %v1316, 6
    %1415 = vrot.lane.b32.xlu0 %v1413, 32
    %v1416 = vpop.permute.xlu0 %1415
    %1417 = vrot.lane.b32.xlu0 %v1414, 32
    %v1418 = vpop.permute.xlu0 %1417
    %v1421 = vmul.f32 %v1407, %v1416
    %v1422 = vmul.f32 %v1409, %v1418
    %1425 = vrot.lane.b32.xlu0 %v1410, 64
    %v1426 = vpop.permute.xlu0 %1425
    %1427 = vrot.lane.b32.xlu0 %v1411, 64
    %v1428 = vpop.permute.xlu0 %1427
    %v1431 = vmul.f32 %v1407, %v1426
    %v1432 = vmul.f32 %v1409, %v1428
    %1435 = vrot.lane.b32.xlu0 %v1431, 32
    %v1436 = vpop.permute.xlu0 %1435
    %1437 = vrot.lane.b32.xlu0 %v1432, 32
    %v1438 = vpop.permute.xlu0 %1437
    %v1441 = vadd.f32 %v1421, %v1436
    %v1442 = vadd.f32 %v1422, %v1438
    %v1443 = vtanh.pop %v1441
    %v1444 = vtanh.pop %v1442
    %1447 = vrot.lane.b32.xlu0 %v1443, 64
    %v1448 = vpop.permute.xlu0 %1447
    %1449 = vrot.lane.b32.xlu0 %v1444, 64
    %v1450 = vpop.permute.xlu0 %1449
    %v1453 = vmul.f32 %v1407, %v1448
    %v1454 = vmul.f32 %v1409, %v1450
    %1455 = vset.pattern.permute.xlu0 3
    %1456 = vperm.xlu0 %1455, %v823
    %v1457 = vpop.permute.xlu0 %1456
    %v1461 = vrot.slane %v1453, 3
    %v1462 = vrot.slane %v1454, 2
    %v1463 = vsel %vm307, %v1462, %v1461
    %1464 = vrot.lane.b32.xlu0 %v1463, 32
    %v1465 = vpop.permute.xlu0 %1464
    %v1467 = vmul.f32 %v1457, %v1465
    %1468 = vset.pattern.permute.xlu0 3
    %1469 = vperm.xlu0 %1468, %v968
    %v1470 = vpop.permute.xlu0 %1469
    %v1472 = vmul.f32 %v1470, %v1305
    %v1473 = vadd.f32 %v1467, %v1472
    %v1476 = vrot.slane %v1441, 3
    %v1477 = vrot.slane %v1442, 2
    %v1478 = vsel %vm307, %v1477, %v1476
    %1479 = vrot.lane.b32.xlu0 %v1478, 96
    %v1480 = vpop.permute.xlu0 %1479
    %v1482 = vmul.f32 %v1457, %v1480
    %v1483 = vmul.f32 %v1470, %v1316
    %v1484 = vadd.f32 %v1482, %v1483
    %v1485 = vadd.f32 %v1317, %v1467
    %v1487 = vsel %vm741, %v1473, 0
    %1489 = vmatprep.subr.mxu0 0.0
    %1490 = vmatpush1.msra.mxu0 0.0
    %1491 = vmatprep.subr.mxu0 0.0
    %1492 = vmatpush1.msra.mxu0 0.0
    %1493 = vmatprep.subr.mxu0 0.0
    %1494 = vmatpush1.msra.mxu0 0.0
    %1495 = vmatprep.subr.mxu0 0.0
    %1496 = vmatpush1.msra.mxu0 0.0
    %1497 = vmatprep.subr.mxu0 0.0
    %1498 = vmatpush1.msra.mxu0 0.0
    %1499 = vmatprep.subr.mxu0 0.0
    %1500 = vmatpush1.msra.mxu0 0.0
    %1501 = vmatprep.subr.mxu0 0.0
    %1502 = vmatpush1.msra.mxu0 0.0
    %1503 = vmatprep.subr.mxu0 0.0
    %1504 = vmatpush1.msra.mxu0 0.0
    %1505 = vmatprep.subr.mxu0 0.0
    %1506 = vmatpush1.msra.mxu0 0.0
    %1507 = vmatprep.subr.mxu0 0.0
    %1508 = vmatpush1.msra.mxu0 0.0
    %1509 = vmatprep.subr.mxu0 0.0
    %1510 = vmatpush1.msra.mxu0 0.0
    %1511 = vmatprep.subr.mxu0 0.0
    %1512 = vmatpush1.msra.mxu0 0.0
    %1513 = vmatprep.subr.mxu0 0.0
    %1514 = vmatpush1.msra.mxu0 %v827
    %1515 = vmatprep.subr.mxu0 0.0
    %1516 = vmatpush1.msra.mxu0 %v826
    %1517 = vmatprep.subr.mxu0 0.0
    %1518 = vmatpush1.msra.mxu0 %v825
    %1519 = vmatprep.subr.mxu0 0.0
    %1520 = vmatpush1.msra.mxu0 %v824
    %1521 = vmatprep.subr.mxu0 0.0
    %1522 = vmatpush2.msra.mxu0 0.0
    %1523 = vmatprep.subr.mxu0 0.0
    %1524 = vmatpush2.msra.mxu0 0.0
    %1525 = vmatprep.subr.mxu0 0.0
    %1526 = vmatpush2.msra.mxu0 0.0
    %1527 = vmatprep.subr.mxu0 0.0
    %1528 = vmatpush2.msra.mxu0 0.0
    %1529 = vmatprep.subr.mxu0 0.0
    %1530 = vmatpush2.msra.mxu0 0.0
    %1531 = vmatprep.subr.mxu0 0.0
    %1532 = vmatpush2.msra.mxu0 0.0
    %1533 = vmatprep.subr.mxu0 0.0
    %1534 = vmatpush2.msra.mxu0 0.0
    %1535 = vmatprep.subr.mxu0 0.0
    %1536 = vmatpush2.msra.mxu0 0.0
    %1537 = vmatprep.subr.mxu0 0.0
    %1538 = vmatpush2.msra.mxu0 0.0
    %1539 = vmatprep.subr.mxu0 0.0
    %1540 = vmatpush2.msra.mxu0 0.0
    %1541 = vmatprep.subr.mxu0 0.0
    %1542 = vmatpush2.msra.mxu0 0.0
    %1543 = vmatprep.subr.mxu0 0.0
    %1544 = vmatpush2.msra.mxu0 0.0
    %1545 = vmatprep.subr.mxu0 0.0
    %1546 = vmatpush2.msra.mxu0 0.0
    %1547 = vmatprep.subr.mxu0 0.0
    %1548 = vmatpush2.msra.mxu0 0.0
    %1549 = vmatprep.subr.mxu0 0.0
    %1550 = vmatpush2.msra.mxu0 0.0
    %1551 = vmatprep.subr.mxu0 0.0
    %1552 = vmatpush2.msra.mxu0 0.0
    %1553 = vmatprep.mubr.f32.mxu0 0.0
    %1554 = vmatmul.mubr.f32.gmra.mxu0 %v1487
    %v1555 = vpop.f32.mrf.mxu0
    %v1556 = vadd.f32 0.0, %v1555
    %v1557 = vpop.f32.mrf.mxu0
    %1558 = vdwg.mxu0
    %v1560 = vrot.slane %v1556, 4
    %v1561 = vrot.slane %v1556, 5
    %v1564 = vadd.f32 %v815, %v1560
    %v1565 = vadd.f32 %v820, %v1561
    %v1566 = vxor.u32 %v1564, 2147483648
    %v1567 = vxor.u32 %v1565, 2147483648
    %v1568 = vmul.f32 %v1566, 1.442695
    %v1569 = vpow.pop %v1568
    %v1570 = vmul.f32 %v1567, 1.442695
    %v1571 = vpow.pop %v1570
    %v1572 = vadd.f32 %v1569, 1.0
    %v1573 = vadd.f32 %v1571, 1.0
    %v1574 = vrcp.pop %v1572
    %v1575 = vmul.f32 1.0, %v1574
    %v1576 = vrcp.pop %v1573
    %v1577 = vmul.f32 1.0, %v1576
    %v1578 = vtanh.pop %v1564
    %v1579 = vtanh.pop %v1565
    %v1581 = vrot.slane %v1484, 4
    %v1582 = vrot.slane %v1484, 5
    %1583 = vrot.lane.b32.xlu0 %v1581, 32
    %v1584 = vpop.permute.xlu0 %1583
    %1585 = vrot.lane.b32.xlu0 %v1582, 32
    %v1586 = vpop.permute.xlu0 %1585
    %v1589 = vmul.f32 %v1575, %v1584
    %v1590 = vmul.f32 %v1577, %v1586
    %1593 = vrot.lane.b32.xlu0 %v1578, 64
    %v1594 = vpop.permute.xlu0 %1593
    %1595 = vrot.lane.b32.xlu0 %v1579, 64
    %v1596 = vpop.permute.xlu0 %1595
    %v1599 = vmul.f32 %v1575, %v1594
    %v1600 = vmul.f32 %v1577, %v1596
    %1603 = vrot.lane.b32.xlu0 %v1599, 32
    %v1604 = vpop.permute.xlu0 %1603
    %1605 = vrot.lane.b32.xlu0 %v1600, 32
    %v1606 = vpop.permute.xlu0 %1605
    %v1609 = vadd.f32 %v1589, %v1604
    %v1610 = vadd.f32 %v1590, %v1606
    %v1611 = vtanh.pop %v1609
    %v1612 = vtanh.pop %v1610
    %1615 = vrot.lane.b32.xlu0 %v1611, 64
    %v1616 = vpop.permute.xlu0 %1615
    %1617 = vrot.lane.b32.xlu0 %v1612, 64
    %v1618 = vpop.permute.xlu0 %1617
    %v1621 = vmul.f32 %v1575, %v1616
    %v1622 = vmul.f32 %v1577, %v1618
    %1623 = vset.pattern.permute.xlu0 4
    %1624 = vperm.xlu0 %1623, %v823
    %v1625 = vpop.permute.xlu0 %1624
    %v1629 = vrot.slane %v1621, 4
    %v1630 = vrot.slane %v1622, 3
    %v1631 = vsel %vm307, %v1630, %v1629
    %1632 = vrot.lane.b32.xlu0 %v1631, 32
    %v1633 = vpop.permute.xlu0 %1632
    %v1635 = vmul.f32 %v1625, %v1633
    %1636 = vset.pattern.permute.xlu0 4
    %1637 = vperm.xlu0 %1636, %v968
    %v1638 = vpop.permute.xlu0 %1637
    %v1640 = vmul.f32 %v1638, %v1473
    %v1641 = vadd.f32 %v1635, %v1640
    %v1644 = vrot.slane %v1609, 4
    %v1645 = vrot.slane %v1610, 3
    %v1646 = vsel %vm307, %v1645, %v1644
    %1647 = vrot.lane.b32.xlu0 %v1646, 96
    %v1648 = vpop.permute.xlu0 %1647
    %v1650 = vmul.f32 %v1625, %v1648
    %v1651 = vmul.f32 %v1638, %v1484
    %v1652 = vadd.f32 %v1650, %v1651
    %v1653 = vadd.f32 %v1485, %v1635
    %v1655 = vsel %vm741, %v1641, 0
    %1657 = vmatprep.subr.mxu0 0.0
    %1658 = vmatpush1.msra.mxu0 0.0
    %1659 = vmatprep.subr.mxu0 0.0
    %1660 = vmatpush1.msra.mxu0 0.0
    %1661 = vmatprep.subr.mxu0 0.0
    %1662 = vmatpush1.msra.mxu0 0.0
    %1663 = vmatprep.subr.mxu0 0.0
    %1664 = vmatpush1.msra.mxu0 0.0
    %1665 = vmatprep.subr.mxu0 0.0
    %1666 = vmatpush1.msra.mxu0 0.0
    %1667 = vmatprep.subr.mxu0 0.0
    %1668 = vmatpush1.msra.mxu0 0.0
    %1669 = vmatprep.subr.mxu0 0.0
    %1670 = vmatpush1.msra.mxu0 0.0
    %1671 = vmatprep.subr.mxu0 0.0
    %1672 = vmatpush1.msra.mxu0 0.0
    %1673 = vmatprep.subr.mxu0 0.0
    %1674 = vmatpush1.msra.mxu0 0.0
    %1675 = vmatprep.subr.mxu0 0.0
    %1676 = vmatpush1.msra.mxu0 0.0
    %1677 = vmatprep.subr.mxu0 0.0
    %1678 = vmatpush1.msra.mxu0 0.0
    %1679 = vmatprep.subr.mxu0 0.0
    %1680 = vmatpush1.msra.mxu0 0.0
    %1681 = vmatprep.subr.mxu0 0.0
    %1682 = vmatpush1.msra.mxu0 %v827
    %1683 = vmatprep.subr.mxu0 0.0
    %1684 = vmatpush1.msra.mxu0 %v826
    %1685 = vmatprep.subr.mxu0 0.0
    %1686 = vmatpush1.msra.mxu0 %v825
    %1687 = vmatprep.subr.mxu0 0.0
    %1688 = vmatpush1.msra.mxu0 %v824
    %1689 = vmatprep.subr.mxu0 0.0
    %1690 = vmatpush2.msra.mxu0 0.0
    %1691 = vmatprep.subr.mxu0 0.0
    %1692 = vmatpush2.msra.mxu0 0.0
    %1693 = vmatprep.subr.mxu0 0.0
    %1694 = vmatpush2.msra.mxu0 0.0
    %1695 = vmatprep.subr.mxu0 0.0
    %1696 = vmatpush2.msra.mxu0 0.0
    %1697 = vmatprep.subr.mxu0 0.0
    %1698 = vmatpush2.msra.mxu0 0.0
    %1699 = vmatprep.subr.mxu0 0.0
    %1700 = vmatpush2.msra.mxu0 0.0
    %1701 = vmatprep.subr.mxu0 0.0
    %1702 = vmatpush2.msra.mxu0 0.0
    %1703 = vmatprep.subr.mxu0 0.0
    %1704 = vmatpush2.msra.mxu0 0.0
    %1705 = vmatprep.subr.mxu0 0.0
    %1706 = vmatpush2.msra.mxu0 0.0
    %1707 = vmatprep.subr.mxu0 0.0
    %1708 = vmatpush2.msra.mxu0 0.0
    %1709 = vmatprep.subr.mxu0 0.0
    %1710 = vmatpush2.msra.mxu0 0.0
    %1711 = vmatprep.subr.mxu0 0.0
    %1712 = vmatpush2.msra.mxu0 0.0
    %1713 = vmatprep.subr.mxu0 0.0
    %1714 = vmatpush2.msra.mxu0 0.0
    %1715 = vmatprep.subr.mxu0 0.0
    %1716 = vmatpush2.msra.mxu0 0.0
    %1717 = vmatprep.subr.mxu0 0.0
    %1718 = vmatpush2.msra.mxu0 0.0
    %1719 = vmatprep.subr.mxu0 0.0
    %1720 = vmatpush2.msra.mxu0 0.0
    %1721 = vmatprep.mubr.f32.mxu0 0.0
    %1722 = vmatmul.mubr.f32.gmra.mxu0 %v1655
    %v1723 = vpop.f32.mrf.mxu0
    %v1724 = vadd.f32 0.0, %v1723
    %v1725 = vpop.f32.mrf.mxu0
    %1726 = vdwg.mxu0
    %v1728 = vrot.slane %v1724, 3
    %v1729 = vrot.slane %v1724, 4
    %v1732 = vadd.f32 %v815, %v1728
    %v1733 = vadd.f32 %v820, %v1729
    %v1734 = vxor.u32 %v1732, 2147483648
    %v1735 = vxor.u32 %v1733, 2147483648
    %v1736 = vmul.f32 %v1734, 1.442695
    %v1737 = vpow.pop %v1736
    %v1738 = vmul.f32 %v1735, 1.442695
    %v1739 = vpow.pop %v1738
    %v1740 = vadd.f32 %v1737, 1.0
    %v1741 = vadd.f32 %v1739, 1.0
    %v1742 = vrcp.pop %v1740
    %v1743 = vmul.f32 1.0, %v1742
    %v1744 = vrcp.pop %v1741
    %v1745 = vmul.f32 1.0, %v1744
    %v1746 = vtanh.pop %v1732
    %v1747 = vtanh.pop %v1733
    %v1749 = vrot.slane %v1652, 3
    %v1750 = vrot.slane %v1652, 4
    %1751 = vrot.lane.b32.xlu0 %v1749, 32
    %v1752 = vpop.permute.xlu0 %1751
    %1753 = vrot.lane.b32.xlu0 %v1750, 32
    %v1754 = vpop.permute.xlu0 %1753
    %v1757 = vmul.f32 %v1743, %v1752
    %v1758 = vmul.f32 %v1745, %v1754
    %1761 = vrot.lane.b32.xlu0 %v1746, 64
    %v1762 = vpop.permute.xlu0 %1761
    %1763 = vrot.lane.b32.xlu0 %v1747, 64
    %v1764 = vpop.permute.xlu0 %1763
    %v1767 = vmul.f32 %v1743, %v1762
    %v1768 = vmul.f32 %v1745, %v1764
    %1771 = vrot.lane.b32.xlu0 %v1767, 32
    %v1772 = vpop.permute.xlu0 %1771
    %1773 = vrot.lane.b32.xlu0 %v1768, 32
    %v1774 = vpop.permute.xlu0 %1773
    %v1777 = vadd.f32 %v1757, %v1772
    %v1778 = vadd.f32 %v1758, %v1774
    %v1779 = vtanh.pop %v1777
    %v1780 = vtanh.pop %v1778
    %1783 = vrot.lane.b32.xlu0 %v1779, 64
    %v1784 = vpop.permute.xlu0 %1783
    %1785 = vrot.lane.b32.xlu0 %v1780, 64
    %v1786 = vpop.permute.xlu0 %1785
    %v1789 = vmul.f32 %v1743, %v1784
    %v1790 = vmul.f32 %v1745, %v1786
    %1791 = vset.pattern.permute.xlu0 5
    %1792 = vperm.xlu0 %1791, %v823
    %v1793 = vpop.permute.xlu0 %1792
    %v1797 = vrot.slane %v1789, 5
    %v1798 = vrot.slane %v1790, 4
    %v1799 = vsel %vm307, %v1798, %v1797
    %1800 = vrot.lane.b32.xlu0 %v1799, 32
    %v1801 = vpop.permute.xlu0 %1800
    %v1803 = vmul.f32 %v1793, %v1801
    %1804 = vset.pattern.permute.xlu0 5
    %1805 = vperm.xlu0 %1804, %v968
    %v1806 = vpop.permute.xlu0 %1805
    %v1808 = vmul.f32 %v1806, %v1641
    %v1809 = vadd.f32 %v1803, %v1808
    %v1812 = vrot.slane %v1777, 5
    %v1813 = vrot.slane %v1778, 4
    %v1814 = vsel %vm307, %v1813, %v1812
    %1815 = vrot.lane.b32.xlu0 %v1814, 96
    %v1816 = vpop.permute.xlu0 %1815
    %v1818 = vmul.f32 %v1793, %v1816
    %v1819 = vmul.f32 %v1806, %v1652
    %v1820 = vadd.f32 %v1818, %v1819
    %v1821 = vadd.f32 %v1653, %v1803
    %v1823 = vsel %vm741, %v1809, 0
    %1825 = vmatprep.subr.mxu0 0.0
    %1826 = vmatpush1.msra.mxu0 0.0
    %1827 = vmatprep.subr.mxu0 0.0
    %1828 = vmatpush1.msra.mxu0 0.0
    %1829 = vmatprep.subr.mxu0 0.0
    %1830 = vmatpush1.msra.mxu0 0.0
    %1831 = vmatprep.subr.mxu0 0.0
    %1832 = vmatpush1.msra.mxu0 0.0
    %1833 = vmatprep.subr.mxu0 0.0
    %1834 = vmatpush1.msra.mxu0 0.0
    %1835 = vmatprep.subr.mxu0 0.0
    %1836 = vmatpush1.msra.mxu0 0.0
    %1837 = vmatprep.subr.mxu0 0.0
    %1838 = vmatpush1.msra.mxu0 0.0
    %1839 = vmatprep.subr.mxu0 0.0
    %1840 = vmatpush1.msra.mxu0 0.0
    %1841 = vmatprep.subr.mxu0 0.0
    %1842 = vmatpush1.msra.mxu0 0.0
    %1843 = vmatprep.subr.mxu0 0.0
    %1844 = vmatpush1.msra.mxu0 0.0
    %1845 = vmatprep.subr.mxu0 0.0
    %1846 = vmatpush1.msra.mxu0 0.0
    %1847 = vmatprep.subr.mxu0 0.0
    %1848 = vmatpush1.msra.mxu0 0.0
    %1849 = vmatprep.subr.mxu0 0.0
    %1850 = vmatpush1.msra.mxu0 %v827
    %1851 = vmatprep.subr.mxu0 0.0
    %1852 = vmatpush1.msra.mxu0 %v826
    %1853 = vmatprep.subr.mxu0 0.0
    %1854 = vmatpush1.msra.mxu0 %v825
    %1855 = vmatprep.subr.mxu0 0.0
    %1856 = vmatpush1.msra.mxu0 %v824
    %1857 = vmatprep.subr.mxu0 0.0
    %1858 = vmatpush2.msra.mxu0 0.0
    %1859 = vmatprep.subr.mxu0 0.0
    %1860 = vmatpush2.msra.mxu0 0.0
    %1861 = vmatprep.subr.mxu0 0.0
    %1862 = vmatpush2.msra.mxu0 0.0
    %1863 = vmatprep.subr.mxu0 0.0
    %1864 = vmatpush2.msra.mxu0 0.0
    %1865 = vmatprep.subr.mxu0 0.0
    %1866 = vmatpush2.msra.mxu0 0.0
    %1867 = vmatprep.subr.mxu0 0.0
    %1868 = vmatpush2.msra.mxu0 0.0
    %1869 = vmatprep.subr.mxu0 0.0
    %1870 = vmatpush2.msra.mxu0 0.0
    %1871 = vmatprep.subr.mxu0 0.0
    %1872 = vmatpush2.msra.mxu0 0.0
    %1873 = vmatprep.subr.mxu0 0.0
    %1874 = vmatpush2.msra.mxu0 0.0
    %1875 = vmatprep.subr.mxu0 0.0
    %1876 = vmatpush2.msra.mxu0 0.0
    %1877 = vmatprep.subr.mxu0 0.0
    %1878 = vmatpush2.msra.mxu0 0.0
    %1879 = vmatprep.subr.mxu0 0.0
    %1880 = vmatpush2.msra.mxu0 0.0
    %1881 = vmatprep.subr.mxu0 0.0
    %1882 = vmatpush2.msra.mxu0 0.0
    %1883 = vmatprep.subr.mxu0 0.0
    %1884 = vmatpush2.msra.mxu0 0.0
    %1885 = vmatprep.subr.mxu0 0.0
    %1886 = vmatpush2.msra.mxu0 0.0
    %1887 = vmatprep.subr.mxu0 0.0
    %1888 = vmatpush2.msra.mxu0 0.0
    %1889 = vmatprep.mubr.f32.mxu0 0.0
    %1890 = vmatmul.mubr.f32.gmra.mxu0 %v1823
    %v1891 = vpop.f32.mrf.mxu0
    %v1892 = vadd.f32 0.0, %v1891
    %v1893 = vpop.f32.mrf.mxu0
    %1894 = vdwg.mxu0
    %v1896 = vrot.slane %v1892, 2
    %v1897 = vrot.slane %v1892, 3
    %v1900 = vadd.f32 %v815, %v1896
    %v1901 = vadd.f32 %v820, %v1897
    %v1902 = vxor.u32 %v1900, 2147483648
    %v1903 = vxor.u32 %v1901, 2147483648
    %v1904 = vmul.f32 %v1902, 1.442695
    %v1905 = vpow.pop %v1904
    %v1906 = vmul.f32 %v1903, 1.442695
    %v1907 = vpow.pop %v1906
    %v1908 = vadd.f32 %v1905, 1.0
    %v1909 = vadd.f32 %v1907, 1.0
    %v1910 = vrcp.pop %v1908
    %v1911 = vmul.f32 1.0, %v1910
    %v1912 = vrcp.pop %v1909
    %v1913 = vmul.f32 1.0, %v1912
    %v1914 = vtanh.pop %v1900
    %v1915 = vtanh.pop %v1901
    %v1917 = vrot.slane %v1820, 2
    %v1918 = vrot.slane %v1820, 3
    %1919 = vrot.lane.b32.xlu0 %v1917, 32
    %v1920 = vpop.permute.xlu0 %1919
    %1921 = vrot.lane.b32.xlu0 %v1918, 32
    %v1922 = vpop.permute.xlu0 %1921
    %v1925 = vmul.f32 %v1911, %v1920
    %v1926 = vmul.f32 %v1913, %v1922
    %1929 = vrot.lane.b32.xlu0 %v1914, 64
    %v1930 = vpop.permute.xlu0 %1929
    %1931 = vrot.lane.b32.xlu0 %v1915, 64
    %v1932 = vpop.permute.xlu0 %1931
    %v1935 = vmul.f32 %v1911, %v1930
    %v1936 = vmul.f32 %v1913, %v1932
    %1939 = vrot.lane.b32.xlu0 %v1935, 32
    %v1940 = vpop.permute.xlu0 %1939
    %1941 = vrot.lane.b32.xlu0 %v1936, 32
    %v1942 = vpop.permute.xlu0 %1941
    %v1945 = vadd.f32 %v1925, %v1940
    %v1946 = vadd.f32 %v1926, %v1942
    %v1947 = vtanh.pop %v1945
    %v1948 = vtanh.pop %v1946
    %1951 = vrot.lane.b32.xlu0 %v1947, 64
    %v1952 = vpop.permute.xlu0 %1951
    %1953 = vrot.lane.b32.xlu0 %v1948, 64
    %v1954 = vpop.permute.xlu0 %1953
    %v1957 = vmul.f32 %v1911, %v1952
    %v1958 = vmul.f32 %v1913, %v1954
    %1959 = vset.pattern.permute.xlu0 6
    %1960 = vperm.xlu0 %1959, %v823
    %v1961 = vpop.permute.xlu0 %1960
    %v1965 = vrot.slane %v1957, 6
    %v1966 = vrot.slane %v1958, 5
    %v1967 = vsel %vm307, %v1966, %v1965
    %1968 = vrot.lane.b32.xlu0 %v1967, 32
    %v1969 = vpop.permute.xlu0 %1968
    %v1971 = vmul.f32 %v1961, %v1969
    %1972 = vset.pattern.permute.xlu0 6
    %1973 = vperm.xlu0 %1972, %v968
    %v1974 = vpop.permute.xlu0 %1973
    %v1976 = vmul.f32 %v1974, %v1809
    %v1977 = vadd.f32 %v1971, %v1976
    %v1980 = vrot.slane %v1945, 6
    %v1981 = vrot.slane %v1946, 5
    %v1982 = vsel %vm307, %v1981, %v1980
    %1983 = vrot.lane.b32.xlu0 %v1982, 96
    %v1984 = vpop.permute.xlu0 %1983
    %v1986 = vmul.f32 %v1961, %v1984
    %v1987 = vmul.f32 %v1974, %v1820
    %v1988 = vadd.f32 %v1986, %v1987
    %v1989 = vadd.f32 %v1821, %v1971
    %v1991 = vsel %vm741, %v1977, 0
    %1993 = vmatprep.subr.mxu0 0.0
    %1994 = vmatpush1.msra.mxu0 0.0
    %1995 = vmatprep.subr.mxu0 0.0
    %1996 = vmatpush1.msra.mxu0 0.0
    %1997 = vmatprep.subr.mxu0 0.0
    %1998 = vmatpush1.msra.mxu0 0.0
    %1999 = vmatprep.subr.mxu0 0.0
    %2000 = vmatpush1.msra.mxu0 0.0
    %2001 = vmatprep.subr.mxu0 0.0
    %2002 = vmatpush1.msra.mxu0 0.0
    %2003 = vmatprep.subr.mxu0 0.0
    %2004 = vmatpush1.msra.mxu0 0.0
    %2005 = vmatprep.subr.mxu0 0.0
    %2006 = vmatpush1.msra.mxu0 0.0
    %2007 = vmatprep.subr.mxu0 0.0
    %2008 = vmatpush1.msra.mxu0 0.0
    %2009 = vmatprep.subr.mxu0 0.0
    %2010 = vmatpush1.msra.mxu0 0.0
    %2011 = vmatprep.subr.mxu0 0.0
    %2012 = vmatpush1.msra.mxu0 0.0
    %2013 = vmatprep.subr.mxu0 0.0
    %2014 = vmatpush1.msra.mxu0 0.0
    %2015 = vmatprep.subr.mxu0 0.0
    %2016 = vmatpush1.msra.mxu0 0.0
    %2017 = vmatprep.subr.mxu0 0.0
    %2018 = vmatpush1.msra.mxu0 %v827
    %2019 = vmatprep.subr.mxu0 0.0
    %2020 = vmatpush1.msra.mxu0 %v826
    %2021 = vmatprep.subr.mxu0 0.0
    %2022 = vmatpush1.msra.mxu0 %v825
    %2023 = vmatprep.subr.mxu0 0.0
    %2024 = vmatpush1.msra.mxu0 %v824
    %2025 = vmatprep.subr.mxu0 0.0
    %2026 = vmatpush2.msra.mxu0 0.0
    %2027 = vmatprep.subr.mxu0 0.0
    %2028 = vmatpush2.msra.mxu0 0.0
    %2029 = vmatprep.subr.mxu0 0.0
    %2030 = vmatpush2.msra.mxu0 0.0
    %2031 = vmatprep.subr.mxu0 0.0
    %2032 = vmatpush2.msra.mxu0 0.0
    %2033 = vmatprep.subr.mxu0 0.0
    %2034 = vmatpush2.msra.mxu0 0.0
    %2035 = vmatprep.subr.mxu0 0.0
    %2036 = vmatpush2.msra.mxu0 0.0
    %2037 = vmatprep.subr.mxu0 0.0
    %2038 = vmatpush2.msra.mxu0 0.0
    %2039 = vmatprep.subr.mxu0 0.0
    %2040 = vmatpush2.msra.mxu0 0.0
    %2041 = vmatprep.subr.mxu0 0.0
    %2042 = vmatpush2.msra.mxu0 0.0
    %2043 = vmatprep.subr.mxu0 0.0
    %2044 = vmatpush2.msra.mxu0 0.0
    %2045 = vmatprep.subr.mxu0 0.0
    %2046 = vmatpush2.msra.mxu0 0.0
    %2047 = vmatprep.subr.mxu0 0.0
    %2048 = vmatpush2.msra.mxu0 0.0
    %2049 = vmatprep.subr.mxu0 0.0
    %2050 = vmatpush2.msra.mxu0 0.0
    %2051 = vmatprep.subr.mxu0 0.0
    %2052 = vmatpush2.msra.mxu0 0.0
    %2053 = vmatprep.subr.mxu0 0.0
    %2054 = vmatpush2.msra.mxu0 0.0
    %2055 = vmatprep.subr.mxu0 0.0
    %2056 = vmatpush2.msra.mxu0 0.0
    %2057 = vmatprep.mubr.f32.mxu0 0.0
    %2058 = vmatmul.mubr.f32.gmra.mxu0 %v1991
    %v2059 = vpop.f32.mrf.mxu0
    %v2060 = vadd.f32 0.0, %v2059
    %v2061 = vpop.f32.mrf.mxu0
    %2062 = vdwg.mxu0
    %v2064 = vrot.slane %v2060, 1
    %v2065 = vrot.slane %v2060, 2
    %v2068 = vadd.f32 %v815, %v2064
    %v2069 = vadd.f32 %v820, %v2065
    %v2070 = vxor.u32 %v2068, 2147483648
    %v2071 = vxor.u32 %v2069, 2147483648
    %v2072 = vmul.f32 %v2070, 1.442695
    %v2073 = vpow.pop %v2072
    %v2074 = vmul.f32 %v2071, 1.442695
    %v2075 = vpow.pop %v2074
    %v2076 = vadd.f32 %v2073, 1.0
    %v2077 = vadd.f32 %v2075, 1.0
    %v2078 = vrcp.pop %v2076
    %v2079 = vmul.f32 1.0, %v2078
    %v2080 = vrcp.pop %v2077
    %v2081 = vmul.f32 1.0, %v2080
    %v2082 = vtanh.pop %v2068
    %v2083 = vtanh.pop %v2069
    %v2085 = vrot.slane %v1988, 1
    %v2086 = vrot.slane %v1988, 2
    %2087 = vrot.lane.b32.xlu0 %v2085, 32
    %v2088 = vpop.permute.xlu0 %2087
    %2089 = vrot.lane.b32.xlu0 %v2086, 32
    %v2090 = vpop.permute.xlu0 %2089
    %v2093 = vmul.f32 %v2079, %v2088
    %v2094 = vmul.f32 %v2081, %v2090
    %2097 = vrot.lane.b32.xlu0 %v2082, 64
    %v2098 = vpop.permute.xlu0 %2097
    %2099 = vrot.lane.b32.xlu0 %v2083, 64
    %v2100 = vpop.permute.xlu0 %2099
    %v2103 = vmul.f32 %v2079, %v2098
    %v2104 = vmul.f32 %v2081, %v2100
    %2107 = vrot.lane.b32.xlu0 %v2103, 32
    %v2108 = vpop.permute.xlu0 %2107
    %2109 = vrot.lane.b32.xlu0 %v2104, 32
    %v2110 = vpop.permute.xlu0 %2109
    %v2113 = vadd.f32 %v2093, %v2108
    %v2114 = vadd.f32 %v2094, %v2110
    %v2115 = vtanh.pop %v2113
    %v2116 = vtanh.pop %v2114
    %2119 = vrot.lane.b32.xlu0 %v2115, 64
    %v2120 = vpop.permute.xlu0 %2119
    %2121 = vrot.lane.b32.xlu0 %v2116, 64
    %v2122 = vpop.permute.xlu0 %2121
    %v2125 = vmul.f32 %v2079, %v2120
    %v2126 = vmul.f32 %v2081, %v2122
    %2127 = vset.pattern.permute.xlu0 7
    %2128 = vperm.xlu0 %2127, %v823
    %v2129 = vpop.permute.xlu0 %2128
    %v2133 = vrot.slane %v2125, 7
    %v2134 = vrot.slane %v2126, 6
    %v2135 = vsel %vm307, %v2134, %v2133
    %2136 = vrot.lane.b32.xlu0 %v2135, 32
    %v2137 = vpop.permute.xlu0 %2136
    %v2139 = vmul.f32 %v2129, %v2137
    %v2140 = vadd.f32 %v1989, %v2139
    %v2141 = vld [vmem:[%s9] sm:$0xff]
    %v2142 = vld [vmem:[%s9 + $0x8] sm:$0xff]
    %v2143 = vld [vmem:[%s9 + $0x10] sm:$0xff]
    %v2144 = vld [vmem:[%s9 + $0x18] sm:$0xff]
    %v2145 = vld [vmem:[%s10] sm:$0x1]
    %v2147 = vlaneseq
    %v2148 = vshrl.u32 %v2147, 7
    %v2149 = vsub.s32 0, %v2148
    %v2150 = vrot.slane %v2145, %v2149
    %v2153 = vsel %vm741, %v2140, 0
    %2155 = vmatprep.subr.mxu0 0.0
    %2156 = vmatpush1.msra.mxu0 0.0
    %2157 = vmatprep.subr.mxu0 0.0
    %2158 = vmatpush1.msra.mxu0 0.0
    %2159 = vmatprep.subr.mxu0 0.0
    %2160 = vmatpush1.msra.mxu0 0.0
    %2161 = vmatprep.subr.mxu0 0.0
    %2162 = vmatpush1.msra.mxu0 0.0
    %2163 = vmatprep.subr.mxu0 0.0
    %2164 = vmatpush1.msra.mxu0 0.0
    %2165 = vmatprep.subr.mxu0 0.0
    %2166 = vmatpush1.msra.mxu0 0.0
    %2167 = vmatprep.subr.mxu0 0.0
    %2168 = vmatpush1.msra.mxu0 0.0
    %2169 = vmatprep.subr.mxu0 0.0
    %2170 = vmatpush1.msra.mxu0 0.0
    %2171 = vmatprep.subr.mxu0 0.0
    %2172 = vmatpush1.msra.mxu0 0.0
    %2173 = vmatprep.subr.mxu0 0.0
    %2174 = vmatpush1.msra.mxu0 0.0
    %2175 = vmatprep.subr.mxu0 0.0
    %2176 = vmatpush1.msra.mxu0 0.0
    %2177 = vmatprep.subr.mxu0 0.0
    %2178 = vmatpush1.msra.mxu0 0.0
    %2179 = vmatprep.subr.mxu0 0.0
    %2180 = vmatpush1.msra.mxu0 %v2144
    %2181 = vmatprep.subr.mxu0 0.0
    %2182 = vmatpush1.msra.mxu0 %v2143
    %2183 = vmatprep.subr.mxu0 0.0
    %2184 = vmatpush1.msra.mxu0 %v2142
    %2185 = vmatprep.subr.mxu0 0.0
    %2186 = vmatpush1.msra.mxu0 %v2141
    %2187 = vmatprep.subr.mxu0 0.0
    %2188 = vmatpush2.msra.mxu0 0.0
    %2189 = vmatprep.subr.mxu0 0.0
    %2190 = vmatpush2.msra.mxu0 0.0
    %2191 = vmatprep.subr.mxu0 0.0
    %2192 = vmatpush2.msra.mxu0 0.0
    %2193 = vmatprep.subr.mxu0 0.0
    %2194 = vmatpush2.msra.mxu0 0.0
    %2195 = vmatprep.subr.mxu0 0.0
    %2196 = vmatpush2.msra.mxu0 0.0
    %2197 = vmatprep.subr.mxu0 0.0
    %2198 = vmatpush2.msra.mxu0 0.0
    %2199 = vmatprep.subr.mxu0 0.0
    %2200 = vmatpush2.msra.mxu0 0.0
    %2201 = vmatprep.subr.mxu0 0.0
    %2202 = vmatpush2.msra.mxu0 0.0
    %2203 = vmatprep.subr.mxu0 0.0
    %2204 = vmatpush2.msra.mxu0 0.0
    %2205 = vmatprep.subr.mxu0 0.0
    %2206 = vmatpush2.msra.mxu0 0.0
    %2207 = vmatprep.subr.mxu0 0.0
    %2208 = vmatpush2.msra.mxu0 0.0
    %2209 = vmatprep.subr.mxu0 0.0
    %2210 = vmatpush2.msra.mxu0 0.0
    %2211 = vmatprep.subr.mxu0 0.0
    %2212 = vmatpush2.msra.mxu0 0.0
    %2213 = vmatprep.subr.mxu0 0.0
    %2214 = vmatpush2.msra.mxu0 0.0
    %2215 = vmatprep.subr.mxu0 0.0
    %2216 = vmatpush2.msra.mxu0 0.0
    %2217 = vmatprep.subr.mxu0 0.0
    %2218 = vmatpush2.msra.mxu0 0.0
    %2219 = vmatprep.mubr.f32.mxu0 0.0
    %2220 = vmatmul.mubr.f32.gmra.mxu0 %v2153
    %v2221 = vpop.f32.mrf.mxu0
    %v2222 = vadd.f32 %v2150, %v2221
    %v2223 = vpop.f32.mrf.mxu0
    %2224 = vdwg.mxu0
    %vm2225 = vcmask 33792
    %2226 = vst.msk [vmem:[#allocation2] sm:$0x3] %vm2225, %v2222
    // Predicated region
    $region46: #{tpu_custom_call.1} parent=1 // pred_check
      _
    $region47: #{tpu_custom_call.1} parent=1 // pred_check_branch
      %2228 = sbr.rel (0) target = $region49
    $region48: #{tpu_custom_call.1} parent=1 // pred_region
      %s2230 = ssub.s32 32, 32
      %2231 = vsyncadd [#allocation3], %s2230
      %s2233 = sshll.u32 [#allocation2], 4
      %s2234 = int_to_ptr.vmem [resolvable:$true] %s2233
      %2236 = dma.vmem_to_hbm [thread:$0]  %s2234, 32, %s11, [#allocation3]
    $region49: #{tpu_custom_call.1} parent=1 // pred_fallthru
      _
    // Predicated region
    $region50: #{tpu_custom_call.1} parent=1 // pred_check
      _
    $region51: #{tpu_custom_call.1} parent=1 // pred_check_branch
      %2238 = sbr.rel (0) target = $region53
    $region52: #{tpu_custom_call.1} parent=1 // pred_region
      %2239 = dma.done [#allocation3], 32
    $region53: #{tpu_custom_call.1} parent=1 // pred_fallthru
      _
    %2240 = vsyncpa [#allocation3], 1

</llo_original>
